<compile_context>
chip_gen: v6e
topology: v6e:2x2x1
jax: 0.10.0
libtpu: 0.0.40
codegen_flags: <defaults>
</compile_context>

<pallas_src>
import math

import jax
import jax.numpy as jnp
from jax.experimental import pallas as pl
from jax.experimental.pallas import tpu as pltpu

# --- model hyper-parameters (from the PyTorch module) ---
d_k = d_v = 8
d_model = 32
n_heads = 4
d_ff = 128
n_layers = 2

# --- packed-parameter slab row layout (per layer; every block is 128 lanes wide
#     and starts on an 8-row boundary) ---
_R_WQKV = 0       # rows   0: 32  concat([Wq, Wk, Wv], out-dim), lanes 96:128 zero
_R_WO = 32        # rows  32: 64  Wo, lanes 0:32 real, rest zero
_R_W1 = 64        # rows  64: 96  W1 [32, 128]
_R_W2 = 96        # rows  96:224  W2, lanes 0:32 real, rest zero
_R_BIAS = 224     # rows 224:232  row0=b_qkv, row1=b_o, row2=b_1, row3=b_2
_SLAB_ROWS = 232
_LANES = 128


def _layernorm(y):
    # nn.LayerNorm(d_model) constructed fresh in forward(): gamma=1, beta=0, eps=1e-5
    mu = jnp.mean(y, axis=-1, keepdims=True)
    var = jnp.mean((y - mu) ** 2, axis=-1, keepdims=True)
    return (y - mu) * jax.lax.rsqrt(var + 1e-5)


def encoder_stack_kernel(x_ref, m_ref, w_ref, out_ref, sa_ref):
    """Full n_layers encoder stack for one batch element.

    x_ref : [1, S, d_model]               pos-encoded input embeddings
    m_ref : [1, 1, S]                     key pad mask (1.0 where key token == 0)
    w_ref : [n_layers, 232, 128]          packed weights/biases of every layer
    out_ref: [1, S, d_model]              encoder output
    sa_ref: [1, n_layers, S, n_heads*d_v] per-layer "self_attn" tensors
    """
    x = x_ref[0]                          # [S, D]
    key_is_pad = m_ref[0] > 0.5           # [1, S]  (hoisted out of all loops)
    inv_sqrt_dk = 1.0 / math.sqrt(d_k)

    for l in range(n_layers):             # static unroll; x stays on-chip
        w_qkv = w_ref[l, _R_WQKV:_R_WQKV + d_model, :]           # [32, 128]
        w_o = w_ref[l, _R_WO:_R_WO + d_model, 0:d_model]         # [32, 32]
        w_1 = w_ref[l, _R_W1:_R_W1 + d_model, :]                 # [32, 128]
        w_2 = w_ref[l, _R_W2:_R_W2 + d_ff, 0:d_model]            # [128, 32]
        bias = w_ref[l, _R_BIAS:_R_BIAS + 8, :]                  # [8, 128]
        b_qkv = bias[0:1, :]                                     # [1, 128]
        b_o = bias[1:2, 0:d_model]                               # [1, 32]
        b_1 = bias[2:3, :]                                       # [1, 128]
        b_2 = bias[3:4, 0:d_model]                               # [1, 32]

        # --- multi-head attention (heads batched; no per-head matmul loop) ---
        proj = jnp.dot(x, w_qkv, preferred_element_type=jnp.float32) + b_qkv  # [S,128]
        q = proj[:, 0:d_model]
        k = proj[:, d_model:2 * d_model]
        v = proj[:, 2 * d_model:3 * d_model]
        qh = jnp.stack([q[:, h * d_k:(h + 1) * d_k] for h in range(n_heads)], axis=0)
        kh = jnp.stack([k[:, h * d_k:(h + 1) * d_k] for h in range(n_heads)], axis=0)
        vh = jnp.stack([v[:, h * d_v:(h + 1) * d_v] for h in range(n_heads)], axis=0)

        sc = jnp.einsum("hqd,hkd->hqk", qh, kh,
                        preferred_element_type=jnp.float32) * inv_sqrt_dk   # [H,S,S]
        sc = jnp.where(key_is_pad[None, :, :], -1e9, sc)   # masked_fill_(mask, -1e9)
        sc = sc - jnp.max(sc, axis=-1, keepdims=True)
        p = jnp.exp(sc)
        p = p * pl.reciprocal(jnp.sum(p, axis=-1, keepdims=True), approx=True)
        ctx = jnp.einsum("hqk,hkd->hqd", p, vh,
                         preferred_element_type=jnp.float32)                # [H,S,dv]

        # [B,H,S,dv].transpose(1,2).reshape(B,S,H*dv) == concat heads on last dim
        self_attn = jnp.concatenate([ctx[h] for h in range(n_heads)], axis=-1)  # [S,32]

        attn_out = jnp.dot(self_attn, w_o, preferred_element_type=jnp.float32) + b_o
        ln1 = _layernorm(attn_out + x)     # LayerNorm(attn_output + residual)

        # --- position-wise FFN ---
        h1 = jnp.maximum(
            jnp.dot(ln1, w_1, preferred_element_type=jnp.float32) + b_1, 0.0)
        ffn = jnp.dot(h1, w_2, preferred_element_type=jnp.float32) + b_2

        sa_ref[0, l] = self_attn
        # NOTE: the PyTorch code uses the *layer input* (inputs_emb) as the
        # second residual, not the attention output.
        x = _layernorm(x + ffn)

    out_ref[0] = x


def run_encoder_stack(x, key_pad_mask, w_slab):
    """x: [B,S,D] f32, key_pad_mask: [B,1,S] f32 (1.0 = pad), w_slab packed."""
    B, S, D = x.shape
    L, R, C = w_slab.shape
    out_shape = [
        jax.ShapeDtypeStruct((B, S, D), jnp.float32),
        jax.ShapeDtypeStruct((B, L, S, n_heads * d_v), jnp.float32),
    ]
    fn = pl.pallas_call(
        encoder_stack_kernel,
        out_shape=out_shape,
        grid_spec=pltpu.PrefetchScalarGridSpec(
            num_scalar_prefetch=0,
            grid=(B,),
            in_specs=[
                pl.BlockSpec((1, S, D), lambda b: (b, 0, 0)),
                pl.BlockSpec((1, 1, S), lambda b: (b, 0, 0)),
                pl.BlockSpec((L, R, C), lambda b: (0, 0, 0)),   # weights VMEM-resident
            ],
            out_specs=[
                pl.BlockSpec((1, S, D), lambda b: (b, 0, 0)),
                pl.BlockSpec((1, L, S, n_heads * d_v), lambda b: (b, 0, 0, 0)),
            ],
        ),
        compiler_params=pltpu.CompilerParams(
            dimension_semantics=("parallel",)),   # B=2 -> one step per TC on v7x
    )
    return fn(x, key_pad_mask, w_slab)


def pack_layer_params(params):
    """Pack one layer's 12 tensors into a single [232, 128] f32 slab."""
    (wq, bq, wk, bk, wv, bv, wo, bo, w1, b1, w2, b2) = params
    w_qkv = jnp.concatenate([wq, wk, wv], axis=1)                       # [32, 96]
    w_qkv = jnp.pad(w_qkv, ((0, 0), (0, _LANES - w_qkv.shape[1])))      # [32, 128]
    w_o_p = jnp.pad(wo, ((0, 0), (0, _LANES - wo.shape[1])))            # [32, 128]
    w_2_p = jnp.pad(w2, ((0, 0), (0, _LANES - w2.shape[1])))            # [128, 128]
    b_qkv = jnp.concatenate(
        [bq.reshape(1, -1), bk.reshape(1, -1), bv.reshape(1, -1)], axis=1)  # [1, 96]
    b_qkv = jnp.pad(b_qkv, ((0, 0), (0, _LANES - b_qkv.shape[1])))
    b_o_p = jnp.pad(bo.reshape(1, -1), ((0, 0), (0, _LANES - bo.size)))
    b_1_p = b1.reshape(1, -1)                                           # [1, 128]
    b_2_p = jnp.pad(b2.reshape(1, -1), ((0, 0), (0, _LANES - b2.size)))
    zeros4 = jnp.zeros((4, _LANES), jnp.float32)
    slab = jnp.concatenate(
        [w_qkv, w_o_p, w1, w_2_p, b_qkv, b_o_p, b_1_p, b_2_p, zeros4], axis=0)
    assert slab.shape == (_SLAB_ROWS, _LANES)
    return slab.astype(jnp.float32)


def make_pos_encoding(max_length, d):
    position = jnp.arange(max_length, dtype=jnp.float32)[:, None]
    div_term = jnp.exp(jnp.arange(0, d, 2, dtype=jnp.float32)
                       * (-math.log(10000.0) / d))
    pe = jnp.zeros((max_length, d), dtype=jnp.float32)
    pe = pe.at[:, 0::2].set(jnp.sin(position * div_term))
    pe = pe.at[:, 1::2].set(jnp.cos(position * div_term))
    return pe  # [max_length, d_model]


def init_layer_params(key):
    ks = jax.random.split(key, 12)
    scale = 0.02

    def w(k, shape):
        return scale * jax.random.normal(k, shape, dtype=jnp.float32)

    wq = w(ks[0], (d_model, n_heads * d_k)); bq = w(ks[1], (1, n_heads * d_k))
    wk = w(ks[2], (d_model, n_heads * d_k)); bk = w(ks[3], (1, n_heads * d_k))
    wv = w(ks[4], (d_model, n_heads * d_v)); bv = w(ks[5], (1, n_heads * d_v))
    wo = w(ks[6], (n_heads * d_v, d_model)); bo = w(ks[7], (1, d_model))
    w1 = w(ks[8], (d_model, d_ff));          b1 = w(ks[9], (1, d_ff))
    w2 = w(ks[10], (d_ff, d_model));         b2 = w(ks[11], (1, d_model))
    return (wq, bq, wk, bk, wv, bv, wo, bo, w1, b1, w2, b2)


@jax.jit
def encoder_forward(enc_inputs, emb_table, pe, all_params):
    B, S = enc_inputs.shape
    # word embedding (gather) + positional encoding  (plain-JAX glue)
    x = emb_table[enc_inputs]                          # [B, S, d_model]
    x = x + pe[:S][None, :, :]                         # PosEmbedding (dropout=identity)
    # key pad mask: 1.0 where key token == 0; only [B,1,S] (broadcast in-kernel)
    key_pad = (enc_inputs == 0).astype(jnp.float32)[:, None, :]    # [B, 1, S]
    # pack all layer weights into one lane-dense slab (single kernel input)
    w_slab = jnp.stack([pack_layer_params(p) for p in all_params], axis=0)
    out, sa_all = run_encoder_stack(x, key_pad, w_slab)
    self_attns = [sa_all[:, l] for l in range(n_layers)]
    return out, self_attns


if __name__ == "__main__":
    B, S = 2, 8
    vocab_size = 11

    key = jax.random.PRNGKey(0)
    k_emb, k_tok, k_l0, k_l1 = jax.random.split(key, 4)

    emb_table = 0.1 * jax.random.normal(k_emb, (vocab_size, d_model),
                                        dtype=jnp.float32)
    # tokens in [1, vocab), with explicit pad (0) tokens to exercise the mask
    enc_inputs = jax.random.randint(k_tok, (B, S), 1, vocab_size, dtype=jnp.int32)
    enc_inputs = enc_inputs.at[1, 6:].set(0)

    pe = make_pos_encoding(500, d_model)
    all_params = [init_layer_params(k_l0), init_layer_params(k_l1)]

    outputs, enc_self_attns = encoder_forward(enc_inputs, emb_table, pe,
                                              all_params)
    outputs = jax.block_until_ready(outputs)
    for sa in enc_self_attns:
        jax.block_until_ready(sa)

    assert outputs.shape == (B, S, d_model)
    assert len(enc_self_attns) == n_layers
    assert enc_self_attns[0].shape == (B, S, n_heads * d_v)
    assert bool(jnp.all(jnp.isfinite(outputs)))
    print("KERNEL_OK")
</pallas_src>

<mosaic_0001>
module attributes {stable_mosaic.version = 11 : i64} {
  func.func @encoder_stack_kernel(%arg0: i32, %arg1: memref<1x8x32xf32, #tpu.memory_space<vmem>>, %arg2: memref<1x1x8xf32, #tpu.memory_space<vmem>>, %arg3: memref<2x232x128xf32, #tpu.memory_space<vmem>>, %arg4: memref<1x8x32xf32, #tpu.memory_space<vmem>>, %arg5: memref<1x2x8x32xf32, #tpu.memory_space<vmem>>) attributes {dimension_semantics = [#tpu.dimension_semantics<parallel>], iteration_bounds = array<i64: 2>, scalar_prefetch = 0 : i64, scratch_operands = 0 : i64, tpu.core_type = #tpu.core_type<tc>, window_params = [{transform_indices = @transform_0, window_bounds = array<i64: 1, 8, 32>}, {transform_indices = @transform_1, window_bounds = array<i64: 1, 1, 8>}, {pipeline_mode = #tpu.pipeline_mode<synchronous>, transform_indices = @transform_2, window_bounds = array<i64: 2, 232, 128>}, {transform_indices = @transform_3, window_bounds = array<i64: 1, 8, 32>}, {transform_indices = @transform_4, window_bounds = array<i64: 1, 2, 8, 32>}]} {
    %c0 = arith.constant 0 : index
    %c0_0 = arith.constant 0 : index
    %c0_1 = arith.constant 0 : index
    %0 = vector.load %arg1[%c0, %c0_0, %c0_1] : memref<1x8x32xf32, #tpu.memory_space<vmem>>, vector<1x8x32xf32>
    %1 = vector.shape_cast %0 : vector<1x8x32xf32> to vector<8x32xf32>
    %c0_2 = arith.constant 0 : index
    %c0_3 = arith.constant 0 : index
    %c0_4 = arith.constant 0 : index
    %2 = vector.load %arg2[%c0_2, %c0_3, %c0_4] : memref<1x1x8xf32, #tpu.memory_space<vmem>>, vector<1x1x8xf32>
    %3 = vector.shape_cast %2 : vector<1x1x8xf32> to vector<1x8xf32>
    %cst = arith.constant 5.000000e-01 : f32
    %4 = vector.broadcast %cst : f32 to vector<1x8xf32>
    %5 = arith.cmpf ogt, %3, %4 : vector<1x8xf32>
    %c0_5 = arith.constant 0 : index
    %c0_6 = arith.constant 0 : index
    %c0_7 = arith.constant 0 : index
    %6 = vector.load %arg3[%c0_5, %c0_6, %c0_7] : memref<2x232x128xf32, #tpu.memory_space<vmem>>, vector<1x32x128xf32>
    %7 = vector.shape_cast %6 : vector<1x32x128xf32> to vector<32x128xf32>
    %c0_8 = arith.constant 0 : index
    %c32 = arith.constant 32 : index
    %c0_9 = arith.constant 0 : index
    %8 = vector.load %arg3[%c0_8, %c32, %c0_9] : memref<2x232x128xf32, #tpu.memory_space<vmem>>, vector<1x32x32xf32>
    %9 = vector.shape_cast %8 : vector<1x32x32xf32> to vector<32x32xf32>
    %c0_10 = arith.constant 0 : index
    %c64 = arith.constant 64 : index
    %c0_11 = arith.constant 0 : index
    %10 = vector.load %arg3[%c0_10, %c64, %c0_11] : memref<2x232x128xf32, #tpu.memory_space<vmem>>, vector<1x32x128xf32>
    %11 = vector.shape_cast %10 : vector<1x32x128xf32> to vector<32x128xf32>
    %c0_12 = arith.constant 0 : index
    %c96 = arith.constant 96 : index
    %c0_13 = arith.constant 0 : index
    %12 = vector.load %arg3[%c0_12, %c96, %c0_13] : memref<2x232x128xf32, #tpu.memory_space<vmem>>, vector<1x128x32xf32>
    %13 = vector.shape_cast %12 : vector<1x128x32xf32> to vector<128x32xf32>
    %c0_14 = arith.constant 0 : index
    %c224 = arith.constant 224 : index
    %c0_15 = arith.constant 0 : index
    %14 = vector.load %arg3[%c0_14, %c224, %c0_15] : memref<2x232x128xf32, #tpu.memory_space<vmem>>, vector<1x8x128xf32>
    %15 = vector.shape_cast %14 : vector<1x8x128xf32> to vector<8x128xf32>
    %16 = vector.extract_strided_slice %15 {offsets = [0, 0], sizes = [1, 128], strides = [1, 1]} : vector<8x128xf32> to vector<1x128xf32>
    %17 = vector.extract_strided_slice %15 {offsets = [1, 0], sizes = [1, 32], strides = [1, 1]} : vector<8x128xf32> to vector<1x32xf32>
    %18 = vector.extract_strided_slice %15 {offsets = [2, 0], sizes = [1, 128], strides = [1, 1]} : vector<8x128xf32> to vector<1x128xf32>
    %19 = vector.extract_strided_slice %15 {offsets = [3, 0], sizes = [1, 32], strides = [1, 1]} : vector<8x128xf32> to vector<1x32xf32>
    %cst_16 = arith.constant dense<0.000000e+00> : vector<8x128xf32>
    %20 = tpu.matmul %1, %7, %cst_16 {dimension_numbers = #tpu.dot_dimension_numbers<[1], [0], [0], [1], [0, 0, 1, 1], [], []>} : vector<8x32xf32>, vector<32x128xf32>, vector<8x128xf32> -> vector<8x128xf32>
    %21 = vector.broadcast %16 : vector<1x128xf32> to vector<8x128xf32>
    %22 = arith.addf %20, %21 : vector<8x128xf32>
    %23 = vector.extract_strided_slice %22 {offsets = [0, 0], sizes = [8, 32], strides = [1, 1]} : vector<8x128xf32> to vector<8x32xf32>
    %24 = vector.extract_strided_slice %22 {offsets = [0, 32], sizes = [8, 32], strides = [1, 1]} : vector<8x128xf32> to vector<8x32xf32>
    %25 = vector.extract_strided_slice %22 {offsets = [0, 64], sizes = [8, 32], strides = [1, 1]} : vector<8x128xf32> to vector<8x32xf32>
    %26 = vector.extract_strided_slice %23 {offsets = [0, 0], sizes = [8, 8], strides = [1, 1]} : vector<8x32xf32> to vector<8x8xf32>
    %27 = vector.extract_strided_slice %23 {offsets = [0, 8], sizes = [8, 8], strides = [1, 1]} : vector<8x32xf32> to vector<8x8xf32>
    %28 = vector.extract_strided_slice %23 {offsets = [0, 16], sizes = [8, 8], strides = [1, 1]} : vector<8x32xf32> to vector<8x8xf32>
    %29 = vector.extract_strided_slice %23 {offsets = [0, 24], sizes = [8, 8], strides = [1, 1]} : vector<8x32xf32> to vector<8x8xf32>
    %30 = vector.shape_cast %26 : vector<8x8xf32> to vector<1x8x8xf32>
    %31 = vector.shape_cast %27 : vector<8x8xf32> to vector<1x8x8xf32>
    %32 = vector.shape_cast %28 : vector<8x8xf32> to vector<1x8x8xf32>
    %33 = vector.shape_cast %29 : vector<8x8xf32> to vector<1x8x8xf32>
    %34 = tpu.concatenate %30, %31, %32, %33 in 0 : vector<1x8x8xf32>, vector<1x8x8xf32>, vector<1x8x8xf32>, vector<1x8x8xf32> -> vector<4x8x8xf32>
    %35 = vector.extract_strided_slice %24 {offsets = [0, 0], sizes = [8, 8], strides = [1, 1]} : vector<8x32xf32> to vector<8x8xf32>
    %36 = vector.extract_strided_slice %24 {offsets = [0, 8], sizes = [8, 8], strides = [1, 1]} : vector<8x32xf32> to vector<8x8xf32>
    %37 = vector.extract_strided_slice %24 {offsets = [0, 16], sizes = [8, 8], strides = [1, 1]} : vector<8x32xf32> to vector<8x8xf32>
    %38 = vector.extract_strided_slice %24 {offsets = [0, 24], sizes = [8, 8], strides = [1, 1]} : vector<8x32xf32> to vector<8x8xf32>
    %39 = vector.shape_cast %35 : vector<8x8xf32> to vector<1x8x8xf32>
    %40 = vector.shape_cast %36 : vector<8x8xf32> to vector<1x8x8xf32>
    %41 = vector.shape_cast %37 : vector<8x8xf32> to vector<1x8x8xf32>
    %42 = vector.shape_cast %38 : vector<8x8xf32> to vector<1x8x8xf32>
    %43 = tpu.concatenate %39, %40, %41, %42 in 0 : vector<1x8x8xf32>, vector<1x8x8xf32>, vector<1x8x8xf32>, vector<1x8x8xf32> -> vector<4x8x8xf32>
    %44 = vector.extract_strided_slice %25 {offsets = [0, 0], sizes = [8, 8], strides = [1, 1]} : vector<8x32xf32> to vector<8x8xf32>
    %45 = vector.extract_strided_slice %25 {offsets = [0, 8], sizes = [8, 8], strides = [1, 1]} : vector<8x32xf32> to vector<8x8xf32>
    %46 = vector.extract_strided_slice %25 {offsets = [0, 16], sizes = [8, 8], strides = [1, 1]} : vector<8x32xf32> to vector<8x8xf32>
    %47 = vector.extract_strided_slice %25 {offsets = [0, 24], sizes = [8, 8], strides = [1, 1]} : vector<8x32xf32> to vector<8x8xf32>
    %48 = vector.shape_cast %44 : vector<8x8xf32> to vector<1x8x8xf32>
    %49 = vector.shape_cast %45 : vector<8x8xf32> to vector<1x8x8xf32>
    %50 = vector.shape_cast %46 : vector<8x8xf32> to vector<1x8x8xf32>
    %51 = vector.shape_cast %47 : vector<8x8xf32> to vector<1x8x8xf32>
    %52 = tpu.concatenate %48, %49, %50, %51 in 0 : vector<1x8x8xf32>, vector<1x8x8xf32>, vector<1x8x8xf32>, vector<1x8x8xf32> -> vector<4x8x8xf32>
    "tpu.trace_start"() <{level = 10 : i32, message = "hqd,hkd->hqk"}> : () -> ()
    %cst_17 = arith.constant dense<0.000000e+00> : vector<4x8x8xf32>
    %53 = tpu.matmul %34, %43, %cst_17 {dimension_numbers = #tpu.dot_dimension_numbers<[2], [2], [1], [1], [0, 0, 0, 1, 1, 1], [0], [0]>} : vector<4x8x8xf32>, vector<4x8x8xf32>, vector<4x8x8xf32> -> vector<4x8x8xf32>
    "tpu.trace_stop"() : () -> ()
    %cst_18 = arith.constant 0.353553385 : f32
    %54 = vector.broadcast %cst_18 : f32 to vector<4x8x8xf32>
    %55 = arith.mulf %53, %54 : vector<4x8x8xf32>
    %56 = vector.shape_cast %5 : vector<1x8xi1> to vector<1x1x8xi1>
    %cst_19 = arith.constant -1.000000e+09 : f32
    %57 = vector.shape_cast %56 : vector<1x1x8xi1> to vector<1x1x8xi1>
    %58 = vector.broadcast %57 : vector<1x1x8xi1> to vector<4x8x8xi1>
    %59 = vector.broadcast %cst_19 : f32 to vector<4x8x8xf32>
    %60 = arith.select %58, %59, %55 : vector<4x8x8xi1>, vector<4x8x8xf32>
    %cst_20 = arith.constant dense<0xFF800000> : vector<4x8xf32>
    %61 = vector.multi_reduction <maximumf>, %60, %cst_20 [2] : vector<4x8x8xf32> to vector<4x8xf32>
    %62 = vector.shape_cast %61 : vector<4x8xf32> to vector<4x8x1xf32>
    %63 = vector.broadcast %62 : vector<4x8x1xf32> to vector<4x8x8xf32>
    %64 = arith.subf %60, %63 : vector<4x8x8xf32>
    %65 = math.exp %64 : vector<4x8x8xf32>
    %cst_21 = arith.constant dense<0.000000e+00> : vector<4x8xf32>
    %66 = vector.multi_reduction <add>, %65, %cst_21 [2] : vector<4x8x8xf32> to vector<4x8xf32>
    %67 = vector.shape_cast %66 : vector<4x8xf32> to vector<4x8x1xf32>
    %68 = tpu.reciprocal %67 {approx = true} : vector<4x8x1xf32> -> vector<4x8x1xf32>
    %69 = vector.broadcast %68 : vector<4x8x1xf32> to vector<4x8x8xf32>
    %70 = arith.mulf %65, %69 : vector<4x8x8xf32>
    "tpu.trace_start"() <{level = 10 : i32, message = "hqk,hkd->hqd"}> : () -> ()
    %cst_22 = arith.constant dense<0.000000e+00> : vector<4x8x8xf32>
    %71 = tpu.matmul %70, %52, %cst_22 {dimension_numbers = #tpu.dot_dimension_numbers<[2], [1], [1], [2], [0, 0, 0, 1, 1, 2], [0], [0]>} : vector<4x8x8xf32>, vector<4x8x8xf32>, vector<4x8x8xf32> -> vector<4x8x8xf32>
    "tpu.trace_stop"() : () -> ()
    %72 = vector.extract_strided_slice %71 {offsets = [0, 0, 0], sizes = [1, 8, 8], strides = [1, 1, 1]} : vector<4x8x8xf32> to vector<1x8x8xf32>
    %73 = vector.shape_cast %72 : vector<1x8x8xf32> to vector<8x8xf32>
    %74 = vector.extract_strided_slice %71 {offsets = [1, 0, 0], sizes = [1, 8, 8], strides = [1, 1, 1]} : vector<4x8x8xf32> to vector<1x8x8xf32>
    %75 = vector.shape_cast %74 : vector<1x8x8xf32> to vector<8x8xf32>
    %76 = vector.extract_strided_slice %71 {offsets = [2, 0, 0], sizes = [1, 8, 8], strides = [1, 1, 1]} : vector<4x8x8xf32> to vector<1x8x8xf32>
    %77 = vector.shape_cast %76 : vector<1x8x8xf32> to vector<8x8xf32>
    %78 = vector.extract_strided_slice %71 {offsets = [3, 0, 0], sizes = [1, 8, 8], strides = [1, 1, 1]} : vector<4x8x8xf32> to vector<1x8x8xf32>
    %79 = vector.shape_cast %78 : vector<1x8x8xf32> to vector<8x8xf32>
    %80 = tpu.concatenate %73, %75, %77, %79 in 1 : vector<8x8xf32>, vector<8x8xf32>, vector<8x8xf32>, vector<8x8xf32> -> vector<8x32xf32>
    %cst_23 = arith.constant dense<0.000000e+00> : vector<8x32xf32>
    %81 = tpu.matmul %80, %9, %cst_23 {dimension_numbers = #tpu.dot_dimension_numbers<[1], [0], [0], [1], [0, 0, 1, 1], [], []>} : vector<8x32xf32>, vector<32x32xf32>, vector<8x32xf32> -> vector<8x32xf32>
    %82 = vector.broadcast %17 : vector<1x32xf32> to vector<8x32xf32>
    %83 = arith.addf %81, %82 : vector<8x32xf32>
    %84 = arith.addf %83, %1 : vector<8x32xf32>
    %cst_24 = arith.constant dense<0.000000e+00> : vector<8xf32>
    %85 = vector.multi_reduction <add>, %84, %cst_24 [1] : vector<8x32xf32> to vector<8xf32>
    %86 = vector.shape_cast %85 : vector<8xf32> to vector<8x1xf32>
    %cst_25 = arith.constant 3.200000e+01 : f32
    %87 = vector.broadcast %cst_25 : f32 to vector<8x1xf32>
    %88 = arith.divf %86, %87 : vector<8x1xf32>
    %89 = vector.broadcast %88 : vector<8x1xf32> to vector<8x32xf32>
    %90 = arith.subf %84, %89 : vector<8x32xf32>
    %91 = arith.mulf %90, %90 : vector<8x32xf32>
    %cst_26 = arith.constant dense<0.000000e+00> : vector<8xf32>
    %92 = vector.multi_reduction <add>, %91, %cst_26 [1] : vector<8x32xf32> to vector<8xf32>
    %93 = vector.shape_cast %92 : vector<8xf32> to vector<8x1xf32>
    %cst_27 = arith.constant 3.200000e+01 : f32
    %94 = vector.broadcast %cst_27 : f32 to vector<8x1xf32>
    %95 = arith.divf %93, %94 : vector<8x1xf32>
    %96 = vector.broadcast %88 : vector<8x1xf32> to vector<8x32xf32>
    %97 = arith.subf %84, %96 : vector<8x32xf32>
    %cst_28 = arith.constant 9.99999974E-6 : f32
    %98 = vector.broadcast %cst_28 : f32 to vector<8x1xf32>
    %99 = arith.addf %95, %98 : vector<8x1xf32>
    %100 = math.rsqrt %99 : vector<8x1xf32>
    %101 = vector.broadcast %100 : vector<8x1xf32> to vector<8x32xf32>
    %102 = arith.mulf %97, %101 : vector<8x32xf32>
    %cst_29 = arith.constant dense<0.000000e+00> : vector<8x128xf32>
    %103 = tpu.matmul %102, %11, %cst_29 {dimension_numbers = #tpu.dot_dimension_numbers<[1], [0], [0], [1], [0, 0, 1, 1], [], []>} : vector<8x32xf32>, vector<32x128xf32>, vector<8x128xf32> -> vector<8x128xf32>
    %104 = vector.broadcast %18 : vector<1x128xf32> to vector<8x128xf32>
    %105 = arith.addf %103, %104 : vector<8x128xf32>
    %cst_30 = arith.constant 0.000000e+00 : f32
    %106 = vector.broadcast %cst_30 : f32 to vector<8x128xf32>
    %107 = arith.maximumf %105, %106 : vector<8x128xf32>
    %cst_31 = arith.constant dense<0.000000e+00> : vector<8x32xf32>
    %108 = tpu.matmul %107, %13, %cst_31 {dimension_numbers = #tpu.dot_dimension_numbers<[1], [0], [0], [1], [0, 0, 1, 1], [], []>} : vector<8x128xf32>, vector<128x32xf32>, vector<8x32xf32> -> vector<8x32xf32>
    %109 = vector.broadcast %19 : vector<1x32xf32> to vector<8x32xf32>
    %110 = arith.addf %108, %109 : vector<8x32xf32>
    %c0_32 = arith.constant 0 : index
    %c0_33 = arith.constant 0 : index
    %c0_34 = arith.constant 0 : index
    %c0_35 = arith.constant 0 : index
    %111 = vector.load %arg5[%c0_32, %c0_33, %c0_34, %c0_35] : memref<1x2x8x32xf32, #tpu.memory_space<vmem>>, vector<1x1x8x32xf32>
    %112 = vector.shape_cast %111 : vector<1x1x8x32xf32> to vector<8x32xf32>
    %113 = vector.shape_cast %80 : vector<8x32xf32> to vector<1x1x8x32xf32>
    tpu.vector_store %arg5[%c0_32, %c0_33, %c0_34, %c0_35], %113 {strides = array<i32>} : memref<1x2x8x32xf32, #tpu.memory_space<vmem>>, vector<1x1x8x32xf32>,
    %114 = arith.addf %1, %110 : vector<8x32xf32>
    %cst_36 = arith.constant dense<0.000000e+00> : vector<8xf32>
    %115 = vector.multi_reduction <add>, %114, %cst_36 [1] : vector<8x32xf32> to vector<8xf32>
    %116 = vector.shape_cast %115 : vector<8xf32> to vector<8x1xf32>
    %cst_37 = arith.constant 3.200000e+01 : f32
    %117 = vector.broadcast %cst_37 : f32 to vector<8x1xf32>
    %118 = arith.divf %116, %117 : vector<8x1xf32>
    %119 = vector.broadcast %118 : vector<8x1xf32> to vector<8x32xf32>
    %120 = arith.subf %114, %119 : vector<8x32xf32>
    %121 = arith.mulf %120, %120 : vector<8x32xf32>
    %cst_38 = arith.constant dense<0.000000e+00> : vector<8xf32>
    %122 = vector.multi_reduction <add>, %121, %cst_38 [1] : vector<8x32xf32> to vector<8xf32>
    %123 = vector.shape_cast %122 : vector<8xf32> to vector<8x1xf32>
    %cst_39 = arith.constant 3.200000e+01 : f32
    %124 = vector.broadcast %cst_39 : f32 to vector<8x1xf32>
    %125 = arith.divf %123, %124 : vector<8x1xf32>
    %126 = vector.broadcast %118 : vector<8x1xf32> to vector<8x32xf32>
    %127 = arith.subf %114, %126 : vector<8x32xf32>
    %cst_40 = arith.constant 9.99999974E-6 : f32
    %128 = vector.broadcast %cst_40 : f32 to vector<8x1xf32>
    %129 = arith.addf %125, %128 : vector<8x1xf32>
    %130 = math.rsqrt %129 : vector<8x1xf32>
    %131 = vector.broadcast %130 : vector<8x1xf32> to vector<8x32xf32>
    %132 = arith.mulf %127, %131 : vector<8x32xf32>
    %c1 = arith.constant 1 : index
    %c0_41 = arith.constant 0 : index
    %c0_42 = arith.constant 0 : index
    %133 = vector.load %arg3[%c1, %c0_41, %c0_42] : memref<2x232x128xf32, #tpu.memory_space<vmem>>, vector<1x32x128xf32>
    %134 = vector.shape_cast %133 : vector<1x32x128xf32> to vector<32x128xf32>
    %c1_43 = arith.constant 1 : index
    %c32_44 = arith.constant 32 : index
    %c0_45 = arith.constant 0 : index
    %135 = vector.load %arg3[%c1_43, %c32_44, %c0_45] : memref<2x232x128xf32, #tpu.memory_space<vmem>>, vector<1x32x32xf32>
    %136 = vector.shape_cast %135 : vector<1x32x32xf32> to vector<32x32xf32>
    %c1_46 = arith.constant 1 : index
    %c64_47 = arith.constant 64 : index
    %c0_48 = arith.constant 0 : index
    %137 = vector.load %arg3[%c1_46, %c64_47, %c0_48] : memref<2x232x128xf32, #tpu.memory_space<vmem>>, vector<1x32x128xf32>
    %138 = vector.shape_cast %137 : vector<1x32x128xf32> to vector<32x128xf32>
    %c1_49 = arith.constant 1 : index
    %c96_50 = arith.constant 96 : index
    %c0_51 = arith.constant 0 : index
    %139 = vector.load %arg3[%c1_49, %c96_50, %c0_51] : memref<2x232x128xf32, #tpu.memory_space<vmem>>, vector<1x128x32xf32>
    %140 = vector.shape_cast %139 : vector<1x128x32xf32> to vector<128x32xf32>
    %c1_52 = arith.constant 1 : index
    %c224_53 = arith.constant 224 : index
    %c0_54 = arith.constant 0 : index
    %141 = vector.load %arg3[%c1_52, %c224_53, %c0_54] : memref<2x232x128xf32, #tpu.memory_space<vmem>>, vector<1x8x128xf32>
    %142 = vector.shape_cast %141 : vector<1x8x128xf32> to vector<8x128xf32>
    %143 = vector.extract_strided_slice %142 {offsets = [0, 0], sizes = [1, 128], strides = [1, 1]} : vector<8x128xf32> to vector<1x128xf32>
    %144 = vector.extract_strided_slice %142 {offsets = [1, 0], sizes = [1, 32], strides = [1, 1]} : vector<8x128xf32> to vector<1x32xf32>
    %145 = vector.extract_strided_slice %142 {offsets = [2, 0], sizes = [1, 128], strides = [1, 1]} : vector<8x128xf32> to vector<1x128xf32>
    %146 = vector.extract_strided_slice %142 {offsets = [3, 0], sizes = [1, 32], strides = [1, 1]} : vector<8x128xf32> to vector<1x32xf32>
    %cst_55 = arith.constant dense<0.000000e+00> : vector<8x128xf32>
    %147 = tpu.matmul %132, %134, %cst_55 {dimension_numbers = #tpu.dot_dimension_numbers<[1], [0], [0], [1], [0, 0, 1, 1], [], []>} : vector<8x32xf32>, vector<32x128xf32>, vector<8x128xf32> -> vector<8x128xf32>
    %148 = vector.broadcast %143 : vector<1x128xf32> to vector<8x128xf32>
    %149 = arith.addf %147, %148 : vector<8x128xf32>
    %150 = vector.extract_strided_slice %149 {offsets = [0, 0], sizes = [8, 32], strides = [1, 1]} : vector<8x128xf32> to vector<8x32xf32>
    %151 = vector.extract_strided_slice %149 {offsets = [0, 32], sizes = [8, 32], strides = [1, 1]} : vector<8x128xf32> to vector<8x32xf32>
    %152 = vector.extract_strided_slice %149 {offsets = [0, 64], sizes = [8, 32], strides = [1, 1]} : vector<8x128xf32> to vector<8x32xf32>
    %153 = vector.extract_strided_slice %150 {offsets = [0, 0], sizes = [8, 8], strides = [1, 1]} : vector<8x32xf32> to vector<8x8xf32>
    %154 = vector.extract_strided_slice %150 {offsets = [0, 8], sizes = [8, 8], strides = [1, 1]} : vector<8x32xf32> to vector<8x8xf32>
    %155 = vector.extract_strided_slice %150 {offsets = [0, 16], sizes = [8, 8], strides = [1, 1]} : vector<8x32xf32> to vector<8x8xf32>
    %156 = vector.extract_strided_slice %150 {offsets = [0, 24], sizes = [8, 8], strides = [1, 1]} : vector<8x32xf32> to vector<8x8xf32>
    %157 = vector.shape_cast %153 : vector<8x8xf32> to vector<1x8x8xf32>
    %158 = vector.shape_cast %154 : vector<8x8xf32> to vector<1x8x8xf32>
    %159 = vector.shape_cast %155 : vector<8x8xf32> to vector<1x8x8xf32>
    %160 = vector.shape_cast %156 : vector<8x8xf32> to vector<1x8x8xf32>
    %161 = tpu.concatenate %157, %158, %159, %160 in 0 : vector<1x8x8xf32>, vector<1x8x8xf32>, vector<1x8x8xf32>, vector<1x8x8xf32> -> vector<4x8x8xf32>
    %162 = vector.extract_strided_slice %151 {offsets = [0, 0], sizes = [8, 8], strides = [1, 1]} : vector<8x32xf32> to vector<8x8xf32>
    %163 = vector.extract_strided_slice %151 {offsets = [0, 8], sizes = [8, 8], strides = [1, 1]} : vector<8x32xf32> to vector<8x8xf32>
    %164 = vector.extract_strided_slice %151 {offsets = [0, 16], sizes = [8, 8], strides = [1, 1]} : vector<8x32xf32> to vector<8x8xf32>
    %165 = vector.extract_strided_slice %151 {offsets = [0, 24], sizes = [8, 8], strides = [1, 1]} : vector<8x32xf32> to vector<8x8xf32>
    %166 = vector.shape_cast %162 : vector<8x8xf32> to vector<1x8x8xf32>
    %167 = vector.shape_cast %163 : vector<8x8xf32> to vector<1x8x8xf32>
    %168 = vector.shape_cast %164 : vector<8x8xf32> to vector<1x8x8xf32>
    %169 = vector.shape_cast %165 : vector<8x8xf32> to vector<1x8x8xf32>
    %170 = tpu.concatenate %166, %167, %168, %169 in 0 : vector<1x8x8xf32>, vector<1x8x8xf32>, vector<1x8x8xf32>, vector<1x8x8xf32> -> vector<4x8x8xf32>
    %171 = vector.extract_strided_slice %152 {offsets = [0, 0], sizes = [8, 8], strides = [1, 1]} : vector<8x32xf32> to vector<8x8xf32>
    %172 = vector.extract_strided_slice %152 {offsets = [0, 8], sizes = [8, 8], strides = [1, 1]} : vector<8x32xf32> to vector<8x8xf32>
    %173 = vector.extract_strided_slice %152 {offsets = [0, 16], sizes = [8, 8], strides = [1, 1]} : vector<8x32xf32> to vector<8x8xf32>
    %174 = vector.extract_strided_slice %152 {offsets = [0, 24], sizes = [8, 8], strides = [1, 1]} : vector<8x32xf32> to vector<8x8xf32>
    %175 = vector.shape_cast %171 : vector<8x8xf32> to vector<1x8x8xf32>
    %176 = vector.shape_cast %172 : vector<8x8xf32> to vector<1x8x8xf32>
    %177 = vector.shape_cast %173 : vector<8x8xf32> to vector<1x8x8xf32>
    %178 = vector.shape_cast %174 : vector<8x8xf32> to vector<1x8x8xf32>
    %179 = tpu.concatenate %175, %176, %177, %178 in 0 : vector<1x8x8xf32>, vector<1x8x8xf32>, vector<1x8x8xf32>, vector<1x8x8xf32> -> vector<4x8x8xf32>
    "tpu.trace_start"() <{level = 10 : i32, message = "hqd,hkd->hqk"}> : () -> ()
    %cst_56 = arith.constant dense<0.000000e+00> : vector<4x8x8xf32>
    %180 = tpu.matmul %161, %170, %cst_56 {dimension_numbers = #tpu.dot_dimension_numbers<[2], [2], [1], [1], [0, 0, 0, 1, 1, 1], [0], [0]>} : vector<4x8x8xf32>, vector<4x8x8xf32>, vector<4x8x8xf32> -> vector<4x8x8xf32>
    "tpu.trace_stop"() : () -> ()
    %cst_57 = arith.constant 0.353553385 : f32
    %181 = vector.broadcast %cst_57 : f32 to vector<4x8x8xf32>
    %182 = arith.mulf %180, %181 : vector<4x8x8xf32>
    %183 = vector.shape_cast %5 : vector<1x8xi1> to vector<1x1x8xi1>
    %cst_58 = arith.constant -1.000000e+09 : f32
    %184 = vector.shape_cast %183 : vector<1x1x8xi1> to vector<1x1x8xi1>
    %185 = vector.broadcast %184 : vector<1x1x8xi1> to vector<4x8x8xi1>
    %186 = vector.broadcast %cst_58 : f32 to vector<4x8x8xf32>
    %187 = arith.select %185, %186, %182 : vector<4x8x8xi1>, vector<4x8x8xf32>
    %cst_59 = arith.constant dense<0xFF800000> : vector<4x8xf32>
    %188 = vector.multi_reduction <maximumf>, %187, %cst_59 [2] : vector<4x8x8xf32> to vector<4x8xf32>
    %189 = vector.shape_cast %188 : vector<4x8xf32> to vector<4x8x1xf32>
    %190 = vector.broadcast %189 : vector<4x8x1xf32> to vector<4x8x8xf32>
    %191 = arith.subf %187, %190 : vector<4x8x8xf32>
    %192 = math.exp %191 : vector<4x8x8xf32>
    %cst_60 = arith.constant dense<0.000000e+00> : vector<4x8xf32>
    %193 = vector.multi_reduction <add>, %192, %cst_60 [2] : vector<4x8x8xf32> to vector<4x8xf32>
    %194 = vector.shape_cast %193 : vector<4x8xf32> to vector<4x8x1xf32>
    %195 = tpu.reciprocal %194 {approx = true} : vector<4x8x1xf32> -> vector<4x8x1xf32>
    %196 = vector.broadcast %195 : vector<4x8x1xf32> to vector<4x8x8xf32>
    %197 = arith.mulf %192, %196 : vector<4x8x8xf32>
    "tpu.trace_start"() <{level = 10 : i32, message = "hqk,hkd->hqd"}> : () -> ()
    %cst_61 = arith.constant dense<0.000000e+00> : vector<4x8x8xf32>
    %198 = tpu.matmul %197, %179, %cst_61 {dimension_numbers = #tpu.dot_dimension_numbers<[2], [1], [1], [2], [0, 0, 0, 1, 1, 2], [0], [0]>} : vector<4x8x8xf32>, vector<4x8x8xf32>, vector<4x8x8xf32> -> vector<4x8x8xf32>
    "tpu.trace_stop"() : () -> ()
    %199 = vector.extract_strided_slice %198 {offsets = [0, 0, 0], sizes = [1, 8, 8], strides = [1, 1, 1]} : vector<4x8x8xf32> to vector<1x8x8xf32>
    %200 = vector.shape_cast %199 : vector<1x8x8xf32> to vector<8x8xf32>
    %201 = vector.extract_strided_slice %198 {offsets = [1, 0, 0], sizes = [1, 8, 8], strides = [1, 1, 1]} : vector<4x8x8xf32> to vector<1x8x8xf32>
    %202 = vector.shape_cast %201 : vector<1x8x8xf32> to vector<8x8xf32>
    %203 = vector.extract_strided_slice %198 {offsets = [2, 0, 0], sizes = [1, 8, 8], strides = [1, 1, 1]} : vector<4x8x8xf32> to vector<1x8x8xf32>
    %204 = vector.shape_cast %203 : vector<1x8x8xf32> to vector<8x8xf32>
    %205 = vector.extract_strided_slice %198 {offsets = [3, 0, 0], sizes = [1, 8, 8], strides = [1, 1, 1]} : vector<4x8x8xf32> to vector<1x8x8xf32>
    %206 = vector.shape_cast %205 : vector<1x8x8xf32> to vector<8x8xf32>
    %207 = tpu.concatenate %200, %202, %204, %206 in 1 : vector<8x8xf32>, vector<8x8xf32>, vector<8x8xf32>, vector<8x8xf32> -> vector<8x32xf32>
    %cst_62 = arith.constant dense<0.000000e+00> : vector<8x32xf32>
    %208 = tpu.matmul %207, %136, %cst_62 {dimension_numbers = #tpu.dot_dimension_numbers<[1], [0], [0], [1], [0, 0, 1, 1], [], []>} : vector<8x32xf32>, vector<32x32xf32>, vector<8x32xf32> -> vector<8x32xf32>
    %209 = vector.broadcast %144 : vector<1x32xf32> to vector<8x32xf32>
    %210 = arith.addf %208, %209 : vector<8x32xf32>
    %211 = arith.addf %210, %132 : vector<8x32xf32>
    %cst_63 = arith.constant dense<0.000000e+00> : vector<8xf32>
    %212 = vector.multi_reduction <add>, %211, %cst_63 [1] : vector<8x32xf32> to vector<8xf32>
    %213 = vector.shape_cast %212 : vector<8xf32> to vector<8x1xf32>
    %cst_64 = arith.constant 3.200000e+01 : f32
    %214 = vector.broadcast %cst_64 : f32 to vector<8x1xf32>
    %215 = arith.divf %213, %214 : vector<8x1xf32>
    %216 = vector.broadcast %215 : vector<8x1xf32> to vector<8x32xf32>
    %217 = arith.subf %211, %216 : vector<8x32xf32>
    %218 = arith.mulf %217, %217 : vector<8x32xf32>
    %cst_65 = arith.constant dense<0.000000e+00> : vector<8xf32>
    %219 = vector.multi_reduction <add>, %218, %cst_65 [1] : vector<8x32xf32> to vector<8xf32>
    %220 = vector.shape_cast %219 : vector<8xf32> to vector<8x1xf32>
    %cst_66 = arith.constant 3.200000e+01 : f32
    %221 = vector.broadcast %cst_66 : f32 to vector<8x1xf32>
    %222 = arith.divf %220, %221 : vector<8x1xf32>
    %223 = vector.broadcast %215 : vector<8x1xf32> to vector<8x32xf32>
    %224 = arith.subf %211, %223 : vector<8x32xf32>
    %cst_67 = arith.constant 9.99999974E-6 : f32
    %225 = vector.broadcast %cst_67 : f32 to vector<8x1xf32>
    %226 = arith.addf %222, %225 : vector<8x1xf32>
    %227 = math.rsqrt %226 : vector<8x1xf32>
    %228 = vector.broadcast %227 : vector<8x1xf32> to vector<8x32xf32>
    %229 = arith.mulf %224, %228 : vector<8x32xf32>
    %cst_68 = arith.constant dense<0.000000e+00> : vector<8x128xf32>
    %230 = tpu.matmul %229, %138, %cst_68 {dimension_numbers = #tpu.dot_dimension_numbers<[1], [0], [0], [1], [0, 0, 1, 1], [], []>} : vector<8x32xf32>, vector<32x128xf32>, vector<8x128xf32> -> vector<8x128xf32>
    %231 = vector.broadcast %145 : vector<1x128xf32> to vector<8x128xf32>
    %232 = arith.addf %230, %231 : vector<8x128xf32>
    %cst_69 = arith.constant 0.000000e+00 : f32
    %233 = vector.broadcast %cst_69 : f32 to vector<8x128xf32>
    %234 = arith.maximumf %232, %233 : vector<8x128xf32>
    %cst_70 = arith.constant dense<0.000000e+00> : vector<8x32xf32>
    %235 = tpu.matmul %234, %140, %cst_70 {dimension_numbers = #tpu.dot_dimension_numbers<[1], [0], [0], [1], [0, 0, 1, 1], [], []>} : vector<8x128xf32>, vector<128x32xf32>, vector<8x32xf32> -> vector<8x32xf32>
    %236 = vector.broadcast %146 : vector<1x32xf32> to vector<8x32xf32>
    %237 = arith.addf %235, %236 : vector<8x32xf32>
    %c0_71 = arith.constant 0 : index
    %c1_72 = arith.constant 1 : index
    %c0_73 = arith.constant 0 : index
    %c0_74 = arith.constant 0 : index
    %238 = vector.load %arg5[%c0_71, %c1_72, %c0_73, %c0_74] : memref<1x2x8x32xf32, #tpu.memory_space<vmem>>, vector<1x1x8x32xf32>
    %239 = vector.shape_cast %238 : vector<1x1x8x32xf32> to vector<8x32xf32>
    %240 = vector.shape_cast %207 : vector<8x32xf32> to vector<1x1x8x32xf32>
    tpu.vector_store %arg5[%c0_71, %c1_72, %c0_73, %c0_74], %240 {strides = array<i32>} : memref<1x2x8x32xf32, #tpu.memory_space<vmem>>, vector<1x1x8x32xf32>,
    %241 = arith.addf %132, %237 : vector<8x32xf32>
    %cst_75 = arith.constant dense<0.000000e+00> : vector<8xf32>
    %242 = vector.multi_reduction <add>, %241, %cst_75 [1] : vector<8x32xf32> to vector<8xf32>
    %243 = vector.shape_cast %242 : vector<8xf32> to vector<8x1xf32>
    %cst_76 = arith.constant 3.200000e+01 : f32
    %244 = vector.broadcast %cst_76 : f32 to vector<8x1xf32>
    %245 = arith.divf %243, %244 : vector<8x1xf32>
    %246 = vector.broadcast %245 : vector<8x1xf32> to vector<8x32xf32>
    %247 = arith.subf %241, %246 : vector<8x32xf32>
    %248 = arith.mulf %247, %247 : vector<8x32xf32>
    %cst_77 = arith.constant dense<0.000000e+00> : vector<8xf32>
    %249 = vector.multi_reduction <add>, %248, %cst_77 [1] : vector<8x32xf32> to vector<8xf32>
    %250 = vector.shape_cast %249 : vector<8xf32> to vector<8x1xf32>
    %cst_78 = arith.constant 3.200000e+01 : f32
    %251 = vector.broadcast %cst_78 : f32 to vector<8x1xf32>
    %252 = arith.divf %250, %251 : vector<8x1xf32>
    %253 = vector.broadcast %245 : vector<8x1xf32> to vector<8x32xf32>
    %254 = arith.subf %241, %253 : vector<8x32xf32>
    %cst_79 = arith.constant 9.99999974E-6 : f32
    %255 = vector.broadcast %cst_79 : f32 to vector<8x1xf32>
    %256 = arith.addf %252, %255 : vector<8x1xf32>
    %257 = math.rsqrt %256 : vector<8x1xf32>
    %258 = vector.broadcast %257 : vector<8x1xf32> to vector<8x32xf32>
    %259 = arith.mulf %254, %258 : vector<8x32xf32>
    %c0_80 = arith.constant 0 : index
    %c0_81 = arith.constant 0 : index
    %c0_82 = arith.constant 0 : index
    %260 = vector.load %arg4[%c0_80, %c0_81, %c0_82] : memref<1x8x32xf32, #tpu.memory_space<vmem>>, vector<1x8x32xf32>
    %261 = vector.shape_cast %260 : vector<1x8x32xf32> to vector<8x32xf32>
    %262 = vector.shape_cast %259 : vector<8x32xf32> to vector<1x8x32xf32>
    tpu.vector_store %arg4[%c0_80, %c0_81, %c0_82], %262 {strides = array<i32>} : memref<1x8x32xf32, #tpu.memory_space<vmem>>, vector<1x8x32xf32>,
    return
  }
  func.func @transform_0(%arg0: i32) -> (i32, i32, i32) {
    %c0_i32 = arith.constant 0 : i32
    %c0_i32_0 = arith.constant 0 : i32
    %c0_i32_1 = arith.constant 0 : i32
    return %arg0, %c0_i32, %c0_i32_0 : i32, i32, i32
  }
  func.func @transform_1(%arg0: i32) -> (i32, i32, i32) {
    %c0_i32 = arith.constant 0 : i32
    %c0_i32_0 = arith.constant 0 : i32
    %c0_i32_1 = arith.constant 0 : i32
    return %arg0, %c0_i32, %c0_i32_0 : i32, i32, i32
  }
  func.func @transform_2(%arg0: i32) -> (i32, i32, i32) {
    %c0_i32 = arith.constant 0 : i32
    %c0_i32_0 = arith.constant 0 : i32
    %c0_i32_1 = arith.constant 0 : i32
    %c0_i32_2 = arith.constant 0 : i32
    return %c0_i32, %c0_i32_0, %c0_i32_1 : i32, i32, i32
  }
  func.func @transform_3(%arg0: i32) -> (i32, i32, i32) {
    %c0_i32 = arith.constant 0 : i32
    %c0_i32_0 = arith.constant 0 : i32
    %c0_i32_1 = arith.constant 0 : i32
    return %arg0, %c0_i32, %c0_i32_0 : i32, i32, i32
  }
  func.func @transform_4(%arg0: i32) -> (i32, i32, i32, i32) {
    %c0_i32 = arith.constant 0 : i32
    %c0_i32_0 = arith.constant 0 : i32
    %c0_i32_1 = arith.constant 0 : i32
    %c0_i32_2 = arith.constant 0 : i32
    return %arg0, %c0_i32, %c0_i32_0, %c0_i32_1 : i32, i32, i32, i32
  }
}

</mosaic_0001>

<llo_original>
// kernel: encoder_forward.1
$region0: #{encoder_forward.1}
  #allocation0 [shape = 'u32[]', space=smem, size = 0x4, offset = 0x4, fixed_abs, tag = 'smem constant byte address 0x4 - core index']
  #allocation1 [shape = 'u32[144,128]{1,0:T(1,128)}', space=vmem, size = 0x12000, scoped, tag = 'internal scratch']
  %s0 = inlined_call_operand.vmem [shape: f32[2,8,32], index: 0, kind: input, shape index: {}]
  %s1 = inlined_call_operand.vmem [shape: f32[2,1,8], index: 1, kind: input, shape index: {}]
  %s2 = inlined_call_operand.vmem [shape: f32[2,232,128], index: 2, kind: input, shape index: {}]
  %s3 = inlined_call_operand.hbm [shape: f32[2,8,32], index: 3, kind: output, shape index: {0}]
  %s4 = inlined_call_operand.vmem [shape: f32[2,2,8,32], index: 4, kind: output, shape index: {1}]
  %5 = xla_tuple %s3, %s4
  %s6 = sld [smem:[#allocation0]]
  $region53: #{encoder_forward.1} parent=0
    _
  %s8 = ssub.s32 1, %s6
  %s9 = scalar_select 0, %s8, %s6
  $region1: #{encoder_forward.1} parent=0
    #allocation2 [shape = 'u8[8192]{0}', space=vmem, size = 0x2000, scoped, tag = 'output window, operand 0']
    #allocation3 [shape = 's32[2]{0}', space=sflag, size = 0x8, scoped, tag = 'scoped memory for encoder_forward.1']
    %10 = vsyncpa [#allocation3], 0
    %s11 = scalar_lea.sflag [#allocation3], 1
    %12 = vsyncpa %s11, 0
    loop: start=0, step=1, limit=4
    $region2: #{encoder_forward.1} parent=1 // loop_pre_header
      _
    $region3: #{encoder_forward.1} parent=1 // loop_header
      %s14 = sphi 0, %s18
      %p15 = scmp.ge.s32.totalorder %s14, 4
      %s24 = sphi 0, %s26
      %s27 = sphi 0, %s24
      %s28 = sphi 0, %s27
      %s44 = sphi 0, %s28
      %s50 = sphi 0, %s52
      %s53 = sphi 0, %s50
      %s54 = sphi 0, %s53
      %s70 = sphi 0, %s54
      %s74 = sphi 0, %s74
      %s76 = sphi 0, %s74
      %s77 = sphi 0, %s76
      %s91 = sphi 0, %s77
      %s97 = sphi 0, %s99
      %s100 = sphi 0, %s97
      %s101 = sphi 0, %s100
      %s117 = sphi 0, %s101
      %s123 = sphi 0, %s125
      %s126 = sphi 0, %s123
      %s127 = sphi 0, %s126
      %s143 = sphi 0, %s127
    $region4: #{encoder_forward.1} parent=1 // loop_header_branch
      %17 = sbr.rel (%p15) target = $region8
    $region5: #{encoder_forward.1} parent=1 // loop_body
      %s19 = ssub.s32 %s14, 1
      %s20 = ssub.s32 %s14, 2
      %s21 = sadd.s32 %s14, 1
      %s22 = ssub.s32 %s14, %s21
      %p23 = scmp.eq.s32.totalorder %s22, 0
      %s25 = sadd.s32 %s24, 1
      %s26 = scalar_select %p23, %s24, %s25
      %p29 = pneg %p23
      %p30 = scmp.eq.s32.totalorder %s14, 1
      %p31 = por %p29, %p30
      %p32 = scmp.ne.s32.totalorder %s24, %s27
      %p33 = scmp.eq.s32.totalorder %s14, 0
      %p34 = por %p32, %p33
      %p35 = scmp.ne.s32.totalorder %s24, %s27
      %p36 = scmp.eq.s32.totalorder %s19, 1
      %p37 = por %p35, %p36
      %p38 = scmp.ne.s32.totalorder %s27, %s28
      %p39 = scmp.eq.s32.totalorder %s19, 0
      %p40 = por %p38, %p39
      %p41 = scmp.ne.s32.totalorder %s27, %s28
      %p42 = scmp.eq.s32.totalorder %s20, 1
      %p43 = por %p41, %p42
      %p45 = scmp.ne.s32.totalorder %s28, %s44
      %p46 = scmp.eq.s32.totalorder %s20, 0
      %p47 = por %p45, %p46
      %s48 = ssub.s32 %s14, %s21
      %p49 = scmp.eq.s32.totalorder %s48, 0
      %s51 = sadd.s32 %s50, 1
      %s52 = scalar_select %p49, %s50, %s51
      %p55 = pneg %p49
      %p56 = scmp.eq.s32.totalorder %s14, 1
      %p57 = por %p55, %p56
      %p58 = scmp.ne.s32.totalorder %s50, %s53
      %p59 = scmp.eq.s32.totalorder %s14, 0
      %p60 = por %p58, %p59
      %p61 = scmp.ne.s32.totalorder %s50, %s53
      %p62 = scmp.eq.s32.totalorder %s19, 1
      %p63 = por %p61, %p62
      %p64 = scmp.ne.s32.totalorder %s53, %s54
      %p65 = scmp.eq.s32.totalorder %s19, 0
      %p66 = por %p64, %p65
      %p67 = scmp.ne.s32.totalorder %s53, %s54
      %p68 = scmp.eq.s32.totalorder %s20, 1
      %p69 = por %p67, %p68
      %p71 = scmp.ne.s32.totalorder %s54, %s70
      %p72 = scmp.eq.s32.totalorder %s20, 0
      %p73 = por %p71, %p72
      %s75 = sadd.s32 %s74, 1
      %p78 = scmp.eq.s32.totalorder %s14, 1
      %p79 = scmp.ne.s32.totalorder %s74, %s76
      %p80 = scmp.eq.s32.totalorder %s14, 0
      %p81 = por %p79, %p80
      %p82 = scmp.ne.s32.totalorder %s74, %s76
      %p83 = scmp.eq.s32.totalorder %s19, 1
      %p84 = por %p82, %p83
      %p85 = scmp.ne.s32.totalorder %s76, %s77
      %p86 = scmp.eq.s32.totalorder %s19, 0
      %p87 = por %p85, %p86
      %p88 = scmp.ne.s32.totalorder %s76, %s77
      %p89 = scmp.eq.s32.totalorder %s20, 1
      %p90 = por %p88, %p89
      %p92 = scmp.ne.s32.totalorder %s77, %s91
      %p93 = scmp.eq.s32.totalorder %s20, 0
      %p94 = por %p92, %p93
      %s95 = ssub.s32 %s14, %s21
      %p96 = scmp.eq.s32.totalorder %s95, 0
      %s98 = sadd.s32 %s97, 1
      %s99 = scalar_select %p96, %s97, %s98
      %p102 = pneg %p96
      %p103 = scmp.eq.s32.totalorder %s14, 1
      %p104 = por %p102, %p103
      %p105 = scmp.ne.s32.totalorder %s97, %s100
      %p106 = scmp.eq.s32.totalorder %s14, 0
      %p107 = por %p105, %p106
      %p108 = scmp.ne.s32.totalorder %s97, %s100
      %p109 = scmp.eq.s32.totalorder %s19, 1
      %p110 = por %p108, %p109
      %p111 = scmp.ne.s32.totalorder %s100, %s101
      %p112 = scmp.eq.s32.totalorder %s19, 0
      %p113 = por %p111, %p112
      %p114 = scmp.ne.s32.totalorder %s100, %s101
      %p115 = scmp.eq.s32.totalorder %s20, 1
      %p116 = por %p114, %p115
      %p118 = scmp.ne.s32.totalorder %s101, %s117
      %p119 = scmp.eq.s32.totalorder %s20, 0
      %p120 = por %p118, %p119
      %s121 = ssub.s32 %s14, %s21
      %p122 = scmp.eq.s32.totalorder %s121, 0
      %s124 = sadd.s32 %s123, 1
      %s125 = scalar_select %p122, %s123, %s124
      %p128 = pneg %p122
      %p129 = scmp.eq.s32.totalorder %s14, 1
      %p130 = por %p128, %p129
      %p131 = scmp.ne.s32.totalorder %s123, %s126
      %p132 = scmp.eq.s32.totalorder %s14, 0
      %p133 = por %p131, %p132
      %p134 = scmp.ne.s32.totalorder %s123, %s126
      %p135 = scmp.eq.s32.totalorder %s19, 1
      %p136 = por %p134, %p135
      %p137 = scmp.ne.s32.totalorder %s126, %s127
      %p138 = scmp.eq.s32.totalorder %s19, 0
      %p139 = por %p137, %p138
      %p140 = scmp.ne.s32.totalorder %s126, %s127
      %p141 = scmp.eq.s32.totalorder %s20, 1
      %p142 = por %p140, %p141
      %p144 = scmp.ne.s32.totalorder %s127, %s143
      %p145 = scmp.eq.s32.totalorder %s20, 0
      %p146 = por %p144, %p145
      %p147 = scmp.le.s32.totalorder 1, %s14
      %p148 = scmp.lt.s32.totalorder %s14, 3
      %p149 = pnand %p147, %p148
      %p150 = pneg %p149
      // Predicated region
      $region9: #{encoder_forward.1} parent=5 // pred_check
        _
      $region10: #{encoder_forward.1} parent=5 // pred_check_branch
        %152 = sbr.rel (%p149) target = $region12
      $region11: #{encoder_forward.1} parent=5 // pred_region
        %s153 = ssub.s32 %s14, 1
        // Predicated region
        $region13: #{encoder_forward.1} parent=11 // pred_check
          %p154 = pneg %p87
        $region14: #{encoder_forward.1} parent=11 // pred_check_branch
          %156 = sbr.rel (%p154) target = $region16
        $region15: #{encoder_forward.1} parent=11 // pred_region
          _
        $region16: #{encoder_forward.1} parent=11 // pred_fallthru
          _
      $region12: #{encoder_forward.1} parent=5 // pred_fallthru
        _
      %p157 = scmp.lt.s32.totalorder %s14, 2
      // Predicated region
      $region17: #{encoder_forward.1} parent=5 // pred_check
        %p158 = pneg %p157
      $region18: #{encoder_forward.1} parent=5 // pred_check_branch
        %160 = sbr.rel (%p158) target = $region20
      $region19: #{encoder_forward.1} parent=5 // pred_region
        // Predicated region
        $region21: #{encoder_forward.1} parent=19 // pred_check
          %p161 = pneg %p34
        $region22: #{encoder_forward.1} parent=19 // pred_check_branch
          %163 = sbr.rel (%p161) target = $region24
        $region23: #{encoder_forward.1} parent=19 // pred_region
          %p164 = scmp.lt.s32.totalorder %s14, 1
          %s165 = scalar_select %p164, %s14, 1
          %s166 = smul.addr %s165, 8
          %s167 = scalar_lea.vmem %s0, %s166
        $region24: #{encoder_forward.1} parent=19 // pred_fallthru
          _
        // Predicated region
        $region25: #{encoder_forward.1} parent=19 // pred_check
          %p168 = pneg %p60
        $region26: #{encoder_forward.1} parent=19 // pred_check_branch
          %170 = sbr.rel (%p168) target = $region28
        $region27: #{encoder_forward.1} parent=19 // pred_region
          %p171 = scmp.lt.s32.totalorder %s14, 1
          %s172 = scalar_select %p171, %s14, 1
          %s173 = scalar_lea.vmem %s1, %s172
        $region28: #{encoder_forward.1} parent=19 // pred_fallthru
          _
      $region20: #{encoder_forward.1} parent=5 // pred_fallthru
        _
      %p174 = scmp.le.s32.totalorder 1, %s14
      %p175 = scmp.lt.s32.totalorder %s14, 3
      %p176 = pnand %p174, %p175
      %p177 = pneg %p176
      // Predicated region
      $region29: #{encoder_forward.1} parent=5 // pred_check
        _
      $region30: #{encoder_forward.1} parent=5 // pred_check_branch
        %179 = sbr.rel (%p176) target = $region32
      $region31: #{encoder_forward.1} parent=5 // pred_region
        %s180 = ssub.s32 %s14, 1
        %p181 = scmp.lt.s32.totalorder %s19, 1
        %s182 = scalar_select %p181, %s19, 1
        %s183 = smul.addr %s182, 8
        %s184 = scalar_lea.vmem %s0, %s183
        %p185 = pneg %p40
        %p186 = pneg %p37
        %p187 = scmp.lt.s32.totalorder %s19, 1
        %s188 = scalar_select %p187, %s19, 1
        %s189 = scalar_lea.vmem %s1, %s188
        %p190 = pneg %p66
        %p191 = pneg %p63
        %p192 = pneg %p87
        %p193 = pneg %p84
        %p194 = pneg %p113
        %p195 = pneg %p110
        %s196 = sand.u32 %s100, 1
        %s197 = scalar_lea.sflag [#allocation3], %s196
        %s198 = sand.u32 %s100, 1
        %s199 = smul.addr %s198, 8
        %s200 = scalar_lea.vmem [#allocation2], %s199
        %p201 = pneg %p139
        %p202 = pneg %p136
        %p203 = scmp.lt.s32.totalorder %s19, 1
        %s204 = scalar_select %p203, %s19, 1
        %s205 = smul.addr %s204, 2
        %s206 = smul.addr %s205, 8
        %s207 = scalar_lea.vmem %s4, %s206
        %p208 = scmp.lt.s32.totalorder %s19, 1
        %s209 = scalar_select %p208, %s19, 1
        %s210 = smul.addr %s209, 8
        %s211 = scalar_lea.vmem %s0, %s210
        %p212 = scmp.lt.s32.totalorder %s19, 1
        %s213 = scalar_select %p212, %s19, 1
        %s214 = scalar_lea.vmem %s1, %s213
        %p215 = scmp.lt.s32.totalorder %s19, 1
        %s216 = scalar_select %p215, %s19, 1
        %s217 = smul.addr %s216, 2
        %s218 = smul.addr %s217, 8
        %s219 = scalar_lea.vmem %s4, %s218
        %v220 = vld [vmem:[%s211] sm:$0xff]
        %v221 = vld [vmem:[%s214] sm:$0x1]
        %vm222 = vcmp.gt.f32.partialorder %v221, 0.5
        %v223 = vld [vmem:[%s2] sm:$0xff]
        %v224 = vld [vmem:[%s2 + $0x8] sm:$0xff]
        %v225 = vld [vmem:[%s2 + $0x10] sm:$0xff]
        %v226 = vld [vmem:[%s2 + $0x18] sm:$0xff]
        %v227 = vld [vmem:[%s2 + $0x20] sm:$0xff]
        %v228 = vld [vmem:[%s2 + $0x28] sm:$0xff]
        %v229 = vld [vmem:[%s2 + $0x30] sm:$0xff]
        %v230 = vld [vmem:[%s2 + $0x38] sm:$0xff]
        %v231 = vld [vmem:[%s2 + $0x40] sm:$0xff]
        %v232 = vld [vmem:[%s2 + $0x48] sm:$0xff]
        %v233 = vld [vmem:[%s2 + $0x50] sm:$0xff]
        %v234 = vld [vmem:[%s2 + $0x58] sm:$0xff]
        %v235 = vld [vmem:[%s2 + $0x60] sm:$0xff]
        %v236 = vld [vmem:[%s2 + $0x68] sm:$0xff]
        %v237 = vld [vmem:[%s2 + $0x70] sm:$0xff]
        %v238 = vld [vmem:[%s2 + $0x78] sm:$0xff]
        %v239 = vld [vmem:[%s2 + $0x80] sm:$0xff]
        %v240 = vld [vmem:[%s2 + $0x88] sm:$0xff]
        %v241 = vld [vmem:[%s2 + $0x90] sm:$0xff]
        %v242 = vld [vmem:[%s2 + $0x98] sm:$0xff]
        %v243 = vld [vmem:[%s2 + $0xa0] sm:$0xff]
        %v244 = vld [vmem:[%s2 + $0xa8] sm:$0xff]
        %v245 = vld [vmem:[%s2 + $0xb0] sm:$0xff]
        %v246 = vld [vmem:[%s2 + $0xb8] sm:$0xff]
        %v247 = vld [vmem:[%s2 + $0xc0] sm:$0xff]
        %v248 = vld [vmem:[%s2 + $0xc8] sm:$0xff]
        %v249 = vld [vmem:[%s2 + $0xd0] sm:$0xff]
        %v250 = vld [vmem:[%s2 + $0xd8] sm:$0xff]
        %v251 = vld [vmem:[%s2 + $0xe0] sm:$0xff]
        %v252 = vlaneseq
        %v253 = vshrl.u32 %v252, 7
        %v254 = vsub.s32 0, %v253
        %v255 = vrot.slane %v251, %v254
        %vm256 = vcmask 261120
        %v258 = vsel %vm256, %v220, 0
        %260 = vmatprep.subr.mxu0 0.0
        %261 = vmatpush1.msra.mxu0 0.0
        %262 = vmatprep.subr.mxu0 0.0
        %263 = vmatpush1.msra.mxu0 0.0
        %264 = vmatprep.subr.mxu0 0.0
        %265 = vmatpush1.msra.mxu0 0.0
        %266 = vmatprep.subr.mxu0 0.0
        %267 = vmatpush1.msra.mxu0 0.0
        %268 = vmatprep.subr.mxu0 0.0
        %269 = vmatpush1.msra.mxu0 0.0
        %270 = vmatprep.subr.mxu0 0.0
        %271 = vmatpush1.msra.mxu0 0.0
        %272 = vmatprep.subr.mxu0 0.0
        %273 = vmatpush1.msra.mxu0 0.0
        %274 = vmatprep.subr.mxu0 0.0
        %275 = vmatpush1.msra.mxu0 0.0
        %276 = vmatprep.subr.mxu0 0.0
        %277 = vmatpush1.msra.mxu0 0.0
        %278 = vmatprep.subr.mxu0 0.0
        %279 = vmatpush1.msra.mxu0 0.0
        %280 = vmatprep.subr.mxu0 0.0
        %281 = vmatpush1.msra.mxu0 0.0
        %282 = vmatprep.subr.mxu0 0.0
        %283 = vmatpush1.msra.mxu0 0.0
        %284 = vmatprep.subr.mxu0 0.0
        %285 = vmatpush1.msra.mxu0 %v226
        %286 = vmatprep.subr.mxu0 0.0
        %287 = vmatpush1.msra.mxu0 %v225
        %288 = vmatprep.subr.mxu0 0.0
        %289 = vmatpush1.msra.mxu0 %v224
        %290 = vmatprep.subr.mxu0 0.0
        %291 = vmatpush1.msra.mxu0 %v223
        %292 = vmatprep.subr.mxu0 0.0
        %293 = vmatpush2.msra.mxu0 0.0
        %294 = vmatprep.subr.mxu0 0.0
        %295 = vmatpush2.msra.mxu0 0.0
        %296 = vmatprep.subr.mxu0 0.0
        %297 = vmatpush2.msra.mxu0 0.0
        %298 = vmatprep.subr.mxu0 0.0
        %299 = vmatpush2.msra.mxu0 0.0
        %300 = vmatprep.subr.mxu0 0.0
        %301 = vmatpush2.msra.mxu0 0.0
        %302 = vmatprep.subr.mxu0 0.0
        %303 = vmatpush2.msra.mxu0 0.0
        %304 = vmatprep.subr.mxu0 0.0
        %305 = vmatpush2.msra.mxu0 0.0
        %306 = vmatprep.subr.mxu0 0.0
        %307 = vmatpush2.msra.mxu0 0.0
        %308 = vmatprep.subr.mxu0 0.0
        %309 = vmatpush2.msra.mxu0 0.0
        %310 = vmatprep.subr.mxu0 0.0
        %311 = vmatpush2.msra.mxu0 0.0
        %312 = vmatprep.subr.mxu0 0.0
        %313 = vmatpush2.msra.mxu0 0.0
        %314 = vmatprep.subr.mxu0 0.0
        %315 = vmatpush2.msra.mxu0 0.0
        %316 = vmatprep.subr.mxu0 0.0
        %317 = vmatpush2.msra.mxu0 0.0
        %318 = vmatprep.subr.mxu0 0.0
        %319 = vmatpush2.msra.mxu0 0.0
        %320 = vmatprep.subr.mxu0 0.0
        %321 = vmatpush2.msra.mxu0 0.0
        %322 = vmatprep.subr.mxu0 0.0
        %323 = vmatpush2.msra.mxu0 0.0
        %324 = vmatprep.mubr.f32.mxu0 0.0
        %325 = vmatmul.mubr.f32.gmra.mxu0 %v258
        %v326 = vpop.f32.mrf.mxu0
        %v327 = vadd.f32 %v255, %v326
        %v328 = vpop.f32.mrf.mxu0
        %329 = vdwg.mxu0
        %331 = vrot.lane.b32.xlu0 %v327, 120
        %v332 = vpop.permute.xlu0 %331
        %333 = vrot.lane.b32.xlu0 %v327, 112
        %v334 = vpop.permute.xlu0 %333
        %335 = vrot.lane.b32.xlu0 %v327, 104
        %v336 = vpop.permute.xlu0 %335
        %337 = vrot.lane.b32.xlu0 %v327, 96
        %v338 = vpop.permute.xlu0 %337
        %vm339 = vcmask 64512
        %v340 = vsel %vm339, %v327, 0
        %v342 = vsel %vm339, %v338, 0
        %344 = vmatprep.subr.mxu0 0.0
        %345 = vmatpush1.xpose.msra.mxu0 0.0
        %346 = vmatprep.subr.mxu0 0.0
        %347 = vmatpush1.xpose.msra.mxu0 0.0
        %348 = vmatprep.subr.mxu0 0.0
        %349 = vmatpush1.xpose.msra.mxu0 0.0
        %350 = vmatprep.subr.mxu0 0.0
        %351 = vmatpush1.xpose.msra.mxu0 0.0
        %352 = vmatprep.subr.mxu0 0.0
        %353 = vmatpush1.xpose.msra.mxu0 0.0
        %354 = vmatprep.subr.mxu0 0.0
        %355 = vmatpush1.xpose.msra.mxu0 0.0
        %356 = vmatprep.subr.mxu0 0.0
        %357 = vmatpush1.xpose.msra.mxu0 0.0
        %358 = vmatprep.subr.mxu0 0.0
        %359 = vmatpush1.xpose.msra.mxu0 0.0
        %360 = vmatprep.subr.mxu0 0.0
        %361 = vmatpush1.xpose.msra.mxu0 0.0
        %362 = vmatprep.subr.mxu0 0.0
        %363 = vmatpush1.xpose.msra.mxu0 0.0
        %364 = vmatprep.subr.mxu0 0.0
        %365 = vmatpush1.xpose.msra.mxu0 0.0
        %366 = vmatprep.subr.mxu0 0.0
        %367 = vmatpush1.xpose.msra.mxu0 0.0
        %368 = vmatprep.subr.mxu0 0.0
        %369 = vmatpush1.xpose.msra.mxu0 0.0
        %370 = vmatprep.subr.mxu0 0.0
        %371 = vmatpush1.xpose.msra.mxu0 0.0
        %372 = vmatprep.subr.mxu0 0.0
        %373 = vmatpush1.xpose.msra.mxu0 0.0
        %374 = vmatprep.subr.mxu0 0.0
        %375 = vmatpush1.xpose.msra.mxu0 %v342
        %376 = vmatprep.subr.mxu0 0.0
        %377 = vmatpush2.xpose.msra.mxu0 0.0
        %378 = vmatprep.subr.mxu0 0.0
        %379 = vmatpush2.xpose.msra.mxu0 0.0
        %380 = vmatprep.subr.mxu0 0.0
        %381 = vmatpush2.xpose.msra.mxu0 0.0
        %382 = vmatprep.subr.mxu0 0.0
        %383 = vmatpush2.xpose.msra.mxu0 0.0
        %384 = vmatprep.subr.mxu0 0.0
        %385 = vmatpush2.xpose.msra.mxu0 0.0
        %386 = vmatprep.subr.mxu0 0.0
        %387 = vmatpush2.xpose.msra.mxu0 0.0
        %388 = vmatprep.subr.mxu0 0.0
        %389 = vmatpush2.xpose.msra.mxu0 0.0
        %390 = vmatprep.subr.mxu0 0.0
        %391 = vmatpush2.xpose.msra.mxu0 0.0
        %392 = vmatprep.subr.mxu0 0.0
        %393 = vmatpush2.xpose.msra.mxu0 0.0
        %394 = vmatprep.subr.mxu0 0.0
        %395 = vmatpush2.xpose.msra.mxu0 0.0
        %396 = vmatprep.subr.mxu0 0.0
        %397 = vmatpush2.xpose.msra.mxu0 0.0
        %398 = vmatprep.subr.mxu0 0.0
        %399 = vmatpush2.xpose.msra.mxu0 0.0
        %400 = vmatprep.subr.mxu0 0.0
        %401 = vmatpush2.xpose.msra.mxu0 0.0
        %402 = vmatprep.subr.mxu0 0.0
        %403 = vmatpush2.xpose.msra.mxu0 0.0
        %404 = vmatprep.subr.mxu0 0.0
        %405 = vmatpush2.xpose.msra.mxu0 0.0
        %406 = vmatprep.subr.mxu0 0.0
        %407 = vmatpush2.xpose.msra.mxu0 0.0
        %408 = vmatprep.mubr.f32.mxu0 0.0
        %409 = vmatmul.mubr.f32.gmra.mxu0 %v340
        %v410 = vpop.f32.mrf.mxu0
        %v411 = vadd.f32 0.0, %v410
        %v412 = vpop.f32.mrf.mxu0
        %413 = vdwg.mxu0
        %414 = vrot.lane.b32.xlu0 %v332, 96
        %v415 = vpop.permute.xlu0 %414
        %v416 = vsel %vm339, %v332, 0
        %v418 = vsel %vm339, %v415, 0
        %420 = vmatprep.subr.mxu0 0.0
        %421 = vmatpush1.xpose.msra.mxu0 0.0
        %422 = vmatprep.subr.mxu0 0.0
        %423 = vmatpush1.xpose.msra.mxu0 0.0
        %424 = vmatprep.subr.mxu0 0.0
        %425 = vmatpush1.xpose.msra.mxu0 0.0
        %426 = vmatprep.subr.mxu0 0.0
        %427 = vmatpush1.xpose.msra.mxu0 0.0
        %428 = vmatprep.subr.mxu0 0.0
        %429 = vmatpush1.xpose.msra.mxu0 0.0
        %430 = vmatprep.subr.mxu0 0.0
        %431 = vmatpush1.xpose.msra.mxu0 0.0
        %432 = vmatprep.subr.mxu0 0.0
        %433 = vmatpush1.xpose.msra.mxu0 0.0
        %434 = vmatprep.subr.mxu0 0.0
        %435 = vmatpush1.xpose.msra.mxu0 0.0
        %436 = vmatprep.subr.mxu0 0.0
        %437 = vmatpush1.xpose.msra.mxu0 0.0
        %438 = vmatprep.subr.mxu0 0.0
        %439 = vmatpush1.xpose.msra.mxu0 0.0
        %440 = vmatprep.subr.mxu0 0.0
        %441 = vmatpush1.xpose.msra.mxu0 0.0
        %442 = vmatprep.subr.mxu0 0.0
        %443 = vmatpush1.xpose.msra.mxu0 0.0
        %444 = vmatprep.subr.mxu0 0.0
        %445 = vmatpush1.xpose.msra.mxu0 0.0
        %446 = vmatprep.subr.mxu0 0.0
        %447 = vmatpush1.xpose.msra.mxu0 0.0
        %448 = vmatprep.subr.mxu0 0.0
        %449 = vmatpush1.xpose.msra.mxu0 0.0
        %450 = vmatprep.subr.mxu0 0.0
        %451 = vmatpush1.xpose.msra.mxu0 %v418
        %452 = vmatprep.subr.mxu0 0.0
        %453 = vmatpush2.xpose.msra.mxu0 0.0
        %454 = vmatprep.subr.mxu0 0.0
        %455 = vmatpush2.xpose.msra.mxu0 0.0
        %456 = vmatprep.subr.mxu0 0.0
        %457 = vmatpush2.xpose.msra.mxu0 0.0
        %458 = vmatprep.subr.mxu0 0.0
        %459 = vmatpush2.xpose.msra.mxu0 0.0
        %460 = vmatprep.subr.mxu0 0.0
        %461 = vmatpush2.xpose.msra.mxu0 0.0
        %462 = vmatprep.subr.mxu0 0.0
        %463 = vmatpush2.xpose.msra.mxu0 0.0
        %464 = vmatprep.subr.mxu0 0.0
        %465 = vmatpush2.xpose.msra.mxu0 0.0
        %466 = vmatprep.subr.mxu0 0.0
        %467 = vmatpush2.xpose.msra.mxu0 0.0
        %468 = vmatprep.subr.mxu0 0.0
        %469 = vmatpush2.xpose.msra.mxu0 0.0
        %470 = vmatprep.subr.mxu0 0.0
        %471 = vmatpush2.xpose.msra.mxu0 0.0
        %472 = vmatprep.subr.mxu0 0.0
        %473 = vmatpush2.xpose.msra.mxu0 0.0
        %474 = vmatprep.subr.mxu0 0.0
        %475 = vmatpush2.xpose.msra.mxu0 0.0
        %476 = vmatprep.subr.mxu0 0.0
        %477 = vmatpush2.xpose.msra.mxu0 0.0
        %478 = vmatprep.subr.mxu0 0.0
        %479 = vmatpush2.xpose.msra.mxu0 0.0
        %480 = vmatprep.subr.mxu0 0.0
        %481 = vmatpush2.xpose.msra.mxu0 0.0
        %482 = vmatprep.subr.mxu0 0.0
        %483 = vmatpush2.xpose.msra.mxu0 0.0
        %484 = vmatprep.mubr.f32.mxu0 0.0
        %485 = vmatmul.mubr.f32.gmra.mxu0 %v416
        %v486 = vpop.f32.mrf.mxu0
        %v487 = vadd.f32 0.0, %v486
        %v488 = vpop.f32.mrf.mxu0
        %489 = vdwg.mxu0
        %490 = vrot.lane.b32.xlu0 %v334, 96
        %v491 = vpop.permute.xlu0 %490
        %v492 = vsel %vm339, %v334, 0
        %v494 = vsel %vm339, %v491, 0
        %496 = vmatprep.subr.mxu0 0.0
        %497 = vmatpush1.xpose.msra.mxu0 0.0
        %498 = vmatprep.subr.mxu0 0.0
        %499 = vmatpush1.xpose.msra.mxu0 0.0
        %500 = vmatprep.subr.mxu0 0.0
        %501 = vmatpush1.xpose.msra.mxu0 0.0
        %502 = vmatprep.subr.mxu0 0.0
        %503 = vmatpush1.xpose.msra.mxu0 0.0
        %504 = vmatprep.subr.mxu0 0.0
        %505 = vmatpush1.xpose.msra.mxu0 0.0
        %506 = vmatprep.subr.mxu0 0.0
        %507 = vmatpush1.xpose.msra.mxu0 0.0
        %508 = vmatprep.subr.mxu0 0.0
        %509 = vmatpush1.xpose.msra.mxu0 0.0
        %510 = vmatprep.subr.mxu0 0.0
        %511 = vmatpush1.xpose.msra.mxu0 0.0
        %512 = vmatprep.subr.mxu0 0.0
        %513 = vmatpush1.xpose.msra.mxu0 0.0
        %514 = vmatprep.subr.mxu0 0.0
        %515 = vmatpush1.xpose.msra.mxu0 0.0
        %516 = vmatprep.subr.mxu0 0.0
        %517 = vmatpush1.xpose.msra.mxu0 0.0
        %518 = vmatprep.subr.mxu0 0.0
        %519 = vmatpush1.xpose.msra.mxu0 0.0
        %520 = vmatprep.subr.mxu0 0.0
        %521 = vmatpush1.xpose.msra.mxu0 0.0
        %522 = vmatprep.subr.mxu0 0.0
        %523 = vmatpush1.xpose.msra.mxu0 0.0
        %524 = vmatprep.subr.mxu0 0.0
        %525 = vmatpush1.xpose.msra.mxu0 0.0
        %526 = vmatprep.subr.mxu0 0.0
        %527 = vmatpush1.xpose.msra.mxu0 %v494
        %528 = vmatprep.subr.mxu0 0.0
        %529 = vmatpush2.xpose.msra.mxu0 0.0
        %530 = vmatprep.subr.mxu0 0.0
        %531 = vmatpush2.xpose.msra.mxu0 0.0
        %532 = vmatprep.subr.mxu0 0.0
        %533 = vmatpush2.xpose.msra.mxu0 0.0
        %534 = vmatprep.subr.mxu0 0.0
        %535 = vmatpush2.xpose.msra.mxu0 0.0
        %536 = vmatprep.subr.mxu0 0.0
        %537 = vmatpush2.xpose.msra.mxu0 0.0
        %538 = vmatprep.subr.mxu0 0.0
        %539 = vmatpush2.xpose.msra.mxu0 0.0
        %540 = vmatprep.subr.mxu0 0.0
        %541 = vmatpush2.xpose.msra.mxu0 0.0
        %542 = vmatprep.subr.mxu0 0.0
        %543 = vmatpush2.xpose.msra.mxu0 0.0
        %544 = vmatprep.subr.mxu0 0.0
        %545 = vmatpush2.xpose.msra.mxu0 0.0
        %546 = vmatprep.subr.mxu0 0.0
        %547 = vmatpush2.xpose.msra.mxu0 0.0
        %548 = vmatprep.subr.mxu0 0.0
        %549 = vmatpush2.xpose.msra.mxu0 0.0
        %550 = vmatprep.subr.mxu0 0.0
        %551 = vmatpush2.xpose.msra.mxu0 0.0
        %552 = vmatprep.subr.mxu0 0.0
        %553 = vmatpush2.xpose.msra.mxu0 0.0
        %554 = vmatprep.subr.mxu0 0.0
        %555 = vmatpush2.xpose.msra.mxu0 0.0
        %556 = vmatprep.subr.mxu0 0.0
        %557 = vmatpush2.xpose.msra.mxu0 0.0
        %558 = vmatprep.subr.mxu0 0.0
        %559 = vmatpush2.xpose.msra.mxu0 0.0
        %560 = vmatprep.mubr.f32.mxu0 0.0
        %561 = vmatmul.mubr.f32.gmra.mxu0 %v492
        %v562 = vpop.f32.mrf.mxu0
        %v563 = vadd.f32 0.0, %v562
        %v564 = vpop.f32.mrf.mxu0
        %565 = vdwg.mxu0
        %566 = vrot.lane.b32.xlu0 %v336, 96
        %v567 = vpop.permute.xlu0 %566
        %v568 = vsel %vm339, %v336, 0
        %v570 = vsel %vm339, %v567, 0
        %572 = vmatprep.subr.mxu0 0.0
        %573 = vmatpush1.xpose.msra.mxu0 0.0
        %574 = vmatprep.subr.mxu0 0.0
        %575 = vmatpush1.xpose.msra.mxu0 0.0
        %576 = vmatprep.subr.mxu0 0.0
        %577 = vmatpush1.xpose.msra.mxu0 0.0
        %578 = vmatprep.subr.mxu0 0.0
        %579 = vmatpush1.xpose.msra.mxu0 0.0
        %580 = vmatprep.subr.mxu0 0.0
        %581 = vmatpush1.xpose.msra.mxu0 0.0
        %582 = vmatprep.subr.mxu0 0.0
        %583 = vmatpush1.xpose.msra.mxu0 0.0
        %584 = vmatprep.subr.mxu0 0.0
        %585 = vmatpush1.xpose.msra.mxu0 0.0
        %586 = vmatprep.subr.mxu0 0.0
        %587 = vmatpush1.xpose.msra.mxu0 0.0
        %588 = vmatprep.subr.mxu0 0.0
        %589 = vmatpush1.xpose.msra.mxu0 0.0
        %590 = vmatprep.subr.mxu0 0.0
        %591 = vmatpush1.xpose.msra.mxu0 0.0
        %592 = vmatprep.subr.mxu0 0.0
        %593 = vmatpush1.xpose.msra.mxu0 0.0
        %594 = vmatprep.subr.mxu0 0.0
        %595 = vmatpush1.xpose.msra.mxu0 0.0
        %596 = vmatprep.subr.mxu0 0.0
        %597 = vmatpush1.xpose.msra.mxu0 0.0
        %598 = vmatprep.subr.mxu0 0.0
        %599 = vmatpush1.xpose.msra.mxu0 0.0
        %600 = vmatprep.subr.mxu0 0.0
        %601 = vmatpush1.xpose.msra.mxu0 0.0
        %602 = vmatprep.subr.mxu0 0.0
        %603 = vmatpush1.xpose.msra.mxu0 %v570
        %604 = vmatprep.subr.mxu0 0.0
        %605 = vmatpush2.xpose.msra.mxu0 0.0
        %606 = vmatprep.subr.mxu0 0.0
        %607 = vmatpush2.xpose.msra.mxu0 0.0
        %608 = vmatprep.subr.mxu0 0.0
        %609 = vmatpush2.xpose.msra.mxu0 0.0
        %610 = vmatprep.subr.mxu0 0.0
        %611 = vmatpush2.xpose.msra.mxu0 0.0
        %612 = vmatprep.subr.mxu0 0.0
        %613 = vmatpush2.xpose.msra.mxu0 0.0
        %614 = vmatprep.subr.mxu0 0.0
        %615 = vmatpush2.xpose.msra.mxu0 0.0
        %616 = vmatprep.subr.mxu0 0.0
        %617 = vmatpush2.xpose.msra.mxu0 0.0
        %618 = vmatprep.subr.mxu0 0.0
        %619 = vmatpush2.xpose.msra.mxu0 0.0
        %620 = vmatprep.subr.mxu0 0.0
        %621 = vmatpush2.xpose.msra.mxu0 0.0
        %622 = vmatprep.subr.mxu0 0.0
        %623 = vmatpush2.xpose.msra.mxu0 0.0
        %624 = vmatprep.subr.mxu0 0.0
        %625 = vmatpush2.xpose.msra.mxu0 0.0
        %626 = vmatprep.subr.mxu0 0.0
        %627 = vmatpush2.xpose.msra.mxu0 0.0
        %628 = vmatprep.subr.mxu0 0.0
        %629 = vmatpush2.xpose.msra.mxu0 0.0
        %630 = vmatprep.subr.mxu0 0.0
        %631 = vmatpush2.xpose.msra.mxu0 0.0
        %632 = vmatprep.subr.mxu0 0.0
        %633 = vmatpush2.xpose.msra.mxu0 0.0
        %634 = vmatprep.subr.mxu0 0.0
        %635 = vmatpush2.xpose.msra.mxu0 0.0
        %636 = vmatprep.mubr.f32.mxu0 0.0
        %637 = vmatmul.mubr.f32.gmra.mxu0 %v568
        %v638 = vpop.f32.mrf.mxu0
        %v639 = vadd.f32 0.0, %v638
        %v640 = vpop.f32.mrf.mxu0
        %641 = vdwg.mxu0
        %v642 = vmul.f32 %v411, 0.35355338
        %v643 = vmul.f32 %v487, 0.35355338
        %v644 = vmul.f32 %v563, 0.35355338
        %v645 = vmul.f32 %v639, 0.35355338
        %v646 = vsel %vm222, 1, 0
        %v647 = vlaneseq
        %v648 = vshrl.u32 %v647, 7
        %v649 = vsub.s32 0, %v648
        %v650 = vrot.slane %v646, %v649
        %vm651 = vcmp.eq.s32.totalorder %v650, 1
        %v652 = vsel %vm651, -1e+09, %v642
        %v653 = vsel %vm651, -1e+09, %v643
        %v654 = vsel %vm651, -1e+09, %v644
        %v655 = vsel %vm651, -1e+09, %v645
        %v656 = vsel %vm339, %v652, -inf
        %657 = vmax.xlane.f32.xlu0 %v656
        %v658 = vpop.xlane.xlu0 %657
        %v659 = vsel %vm339, %v653, -inf
        %660 = vmax.xlane.f32.xlu0 %v659
        %v661 = vpop.xlane.xlu0 %660
        %v662 = vsel %vm339, %v654, -inf
        %663 = vmax.xlane.f32.xlu0 %v662
        %v664 = vpop.xlane.xlu0 %663
        %v665 = vsel %vm339, %v655, -inf
        %666 = vmax.xlane.f32.xlu0 %v665
        %v667 = vpop.xlane.xlu0 %666
        %v668 = vsub.f32 %v652, %v658
        %v669 = vsub.f32 %v653, %v661
        %v670 = vsub.f32 %v654, %v664
        %v671 = vsub.f32 %v655, %v667
        %v672 = vmul.f32 %v668, 1.442695
        %v673 = vpow.pop %v672
        %v674 = vmul.f32 %v669, 1.442695
        %v675 = vpow.pop %v674
        %v676 = vmul.f32 %v670, 1.442695
        %v677 = vpow.pop %v676
        %v678 = vmul.f32 %v671, 1.442695
        %v679 = vpow.pop %v678
        %v680 = vsel %vm339, %v673, 0.0
        %681 = vadd.xlane.f32.xlu0 %v680
        %v682 = vpop.xlane.xlu0 %681
        %v683 = vsel %vm339, %v675, 0.0
        %684 = vadd.xlane.f32.xlu0 %v683
        %v685 = vpop.xlane.xlu0 %684
        %v686 = vsel %vm339, %v677, 0.0
        %687 = vadd.xlane.f32.xlu0 %v686
        %v688 = vpop.xlane.xlu0 %687
        %v689 = vsel %vm339, %v679, 0.0
        %690 = vadd.xlane.f32.xlu0 %v689
        %v691 = vpop.xlane.xlu0 %690
        %v692 = vrcp.pop %v682
        %v693 = vrcp.pop %v685
        %v694 = vrcp.pop %v688
        %v695 = vrcp.pop %v691
        %v696 = vmul.f32 %v673, %v692
        %v697 = vmul.f32 %v675, %v693
        %v698 = vmul.f32 %v677, %v694
        %v699 = vmul.f32 %v679, %v695
        %700 = vrot.lane.b32.xlu0 %v327, 64
        %v701 = vpop.permute.xlu0 %700
        %v704 = vsel %vm339, %v696, 0
        %706 = vmatprep.subr.mxu0 0.0
        %707 = vmatpush1.msra.mxu0 0.0
        %708 = vmatprep.subr.mxu0 0.0
        %709 = vmatpush1.msra.mxu0 0.0
        %710 = vmatprep.subr.mxu0 0.0
        %711 = vmatpush1.msra.mxu0 0.0
        %712 = vmatprep.subr.mxu0 0.0
        %713 = vmatpush1.msra.mxu0 0.0
        %714 = vmatprep.subr.mxu0 0.0
        %715 = vmatpush1.msra.mxu0 0.0
        %716 = vmatprep.subr.mxu0 0.0
        %717 = vmatpush1.msra.mxu0 0.0
        %718 = vmatprep.subr.mxu0 0.0
        %719 = vmatpush1.msra.mxu0 0.0
        %720 = vmatprep.subr.mxu0 0.0
        %721 = vmatpush1.msra.mxu0 0.0
        %722 = vmatprep.subr.mxu0 0.0
        %723 = vmatpush1.msra.mxu0 0.0
        %724 = vmatprep.subr.mxu0 0.0
        %725 = vmatpush1.msra.mxu0 0.0
        %726 = vmatprep.subr.mxu0 0.0
        %727 = vmatpush1.msra.mxu0 0.0
        %728 = vmatprep.subr.mxu0 0.0
        %729 = vmatpush1.msra.mxu0 0.0
        %730 = vmatprep.subr.mxu0 0.0
        %731 = vmatpush1.msra.mxu0 0.0
        %732 = vmatprep.subr.mxu0 0.0
        %733 = vmatpush1.msra.mxu0 0.0
        %734 = vmatprep.subr.mxu0 0.0
        %735 = vmatpush1.msra.mxu0 0.0
        %736 = vmatprep.subr.mxu0 0.0
        %737 = vmatpush1.msra.mxu0 %v701
        %738 = vmatprep.subr.mxu0 0.0
        %739 = vmatpush2.msra.mxu0 0.0
        %740 = vmatprep.subr.mxu0 0.0
        %741 = vmatpush2.msra.mxu0 0.0
        %742 = vmatprep.subr.mxu0 0.0
        %743 = vmatpush2.msra.mxu0 0.0
        %744 = vmatprep.subr.mxu0 0.0
        %745 = vmatpush2.msra.mxu0 0.0
        %746 = vmatprep.subr.mxu0 0.0
        %747 = vmatpush2.msra.mxu0 0.0
        %748 = vmatprep.subr.mxu0 0.0
        %749 = vmatpush2.msra.mxu0 0.0
        %750 = vmatprep.subr.mxu0 0.0
        %751 = vmatpush2.msra.mxu0 0.0
        %752 = vmatprep.subr.mxu0 0.0
        %753 = vmatpush2.msra.mxu0 0.0
        %754 = vmatprep.subr.mxu0 0.0
        %755 = vmatpush2.msra.mxu0 0.0
        %756 = vmatprep.subr.mxu0 0.0
        %757 = vmatpush2.msra.mxu0 0.0
        %758 = vmatprep.subr.mxu0 0.0
        %759 = vmatpush2.msra.mxu0 0.0
        %760 = vmatprep.subr.mxu0 0.0
        %761 = vmatpush2.msra.mxu0 0.0
        %762 = vmatprep.subr.mxu0 0.0
        %763 = vmatpush2.msra.mxu0 0.0
        %764 = vmatprep.subr.mxu0 0.0
        %765 = vmatpush2.msra.mxu0 0.0
        %766 = vmatprep.subr.mxu0 0.0
        %767 = vmatpush2.msra.mxu0 0.0
        %768 = vmatprep.subr.mxu0 0.0
        %769 = vmatpush2.msra.mxu0 0.0
        %770 = vmatprep.mubr.f32.mxu0 0.0
        %771 = vmatmul.mubr.f32.gmra.mxu0 %v704
        %v772 = vpop.f32.mrf.mxu0
        %v773 = vadd.f32 0.0, %v772
        %v774 = vpop.f32.mrf.mxu0
        %775 = vdwg.mxu0
        %776 = vrot.lane.b32.xlu0 %v332, 64
        %v777 = vpop.permute.xlu0 %776
        %v780 = vsel %vm339, %v697, 0
        %782 = vmatprep.subr.mxu0 0.0
        %783 = vmatpush1.msra.mxu0 0.0
        %784 = vmatprep.subr.mxu0 0.0
        %785 = vmatpush1.msra.mxu0 0.0
        %786 = vmatprep.subr.mxu0 0.0
        %787 = vmatpush1.msra.mxu0 0.0
        %788 = vmatprep.subr.mxu0 0.0
        %789 = vmatpush1.msra.mxu0 0.0
        %790 = vmatprep.subr.mxu0 0.0
        %791 = vmatpush1.msra.mxu0 0.0
        %792 = vmatprep.subr.mxu0 0.0
        %793 = vmatpush1.msra.mxu0 0.0
        %794 = vmatprep.subr.mxu0 0.0
        %795 = vmatpush1.msra.mxu0 0.0
        %796 = vmatprep.subr.mxu0 0.0
        %797 = vmatpush1.msra.mxu0 0.0
        %798 = vmatprep.subr.mxu0 0.0
        %799 = vmatpush1.msra.mxu0 0.0
        %800 = vmatprep.subr.mxu0 0.0
        %801 = vmatpush1.msra.mxu0 0.0
        %802 = vmatprep.subr.mxu0 0.0
        %803 = vmatpush1.msra.mxu0 0.0
        %804 = vmatprep.subr.mxu0 0.0
        %805 = vmatpush1.msra.mxu0 0.0
        %806 = vmatprep.subr.mxu0 0.0
        %807 = vmatpush1.msra.mxu0 0.0
        %808 = vmatprep.subr.mxu0 0.0
        %809 = vmatpush1.msra.mxu0 0.0
        %810 = vmatprep.subr.mxu0 0.0
        %811 = vmatpush1.msra.mxu0 0.0
        %812 = vmatprep.subr.mxu0 0.0
        %813 = vmatpush1.msra.mxu0 %v777
        %814 = vmatprep.subr.mxu0 0.0
        %815 = vmatpush2.msra.mxu0 0.0
        %816 = vmatprep.subr.mxu0 0.0
        %817 = vmatpush2.msra.mxu0 0.0
        %818 = vmatprep.subr.mxu0 0.0
        %819 = vmatpush2.msra.mxu0 0.0
        %820 = vmatprep.subr.mxu0 0.0
        %821 = vmatpush2.msra.mxu0 0.0
        %822 = vmatprep.subr.mxu0 0.0
        %823 = vmatpush2.msra.mxu0 0.0
        %824 = vmatprep.subr.mxu0 0.0
        %825 = vmatpush2.msra.mxu0 0.0
        %826 = vmatprep.subr.mxu0 0.0
        %827 = vmatpush2.msra.mxu0 0.0
        %828 = vmatprep.subr.mxu0 0.0
        %829 = vmatpush2.msra.mxu0 0.0
        %830 = vmatprep.subr.mxu0 0.0
        %831 = vmatpush2.msra.mxu0 0.0
        %832 = vmatprep.subr.mxu0 0.0
        %833 = vmatpush2.msra.mxu0 0.0
        %834 = vmatprep.subr.mxu0 0.0
        %835 = vmatpush2.msra.mxu0 0.0
        %836 = vmatprep.subr.mxu0 0.0
        %837 = vmatpush2.msra.mxu0 0.0
        %838 = vmatprep.subr.mxu0 0.0
        %839 = vmatpush2.msra.mxu0 0.0
        %840 = vmatprep.subr.mxu0 0.0
        %841 = vmatpush2.msra.mxu0 0.0
        %842 = vmatprep.subr.mxu0 0.0
        %843 = vmatpush2.msra.mxu0 0.0
        %844 = vmatprep.subr.mxu0 0.0
        %845 = vmatpush2.msra.mxu0 0.0
        %846 = vmatprep.mubr.f32.mxu0 0.0
        %847 = vmatmul.mubr.f32.gmra.mxu0 %v780
        %v848 = vpop.f32.mrf.mxu0
        %v849 = vadd.f32 0.0, %v848
        %v850 = vpop.f32.mrf.mxu0
        %851 = vdwg.mxu0
        %852 = vrot.lane.b32.xlu0 %v334, 64
        %v853 = vpop.permute.xlu0 %852
        %v856 = vsel %vm339, %v698, 0
        %858 = vmatprep.subr.mxu0 0.0
        %859 = vmatpush1.msra.mxu0 0.0
        %860 = vmatprep.subr.mxu0 0.0
        %861 = vmatpush1.msra.mxu0 0.0
        %862 = vmatprep.subr.mxu0 0.0
        %863 = vmatpush1.msra.mxu0 0.0
        %864 = vmatprep.subr.mxu0 0.0
        %865 = vmatpush1.msra.mxu0 0.0
        %866 = vmatprep.subr.mxu0 0.0
        %867 = vmatpush1.msra.mxu0 0.0
        %868 = vmatprep.subr.mxu0 0.0
        %869 = vmatpush1.msra.mxu0 0.0
        %870 = vmatprep.subr.mxu0 0.0
        %871 = vmatpush1.msra.mxu0 0.0
        %872 = vmatprep.subr.mxu0 0.0
        %873 = vmatpush1.msra.mxu0 0.0
        %874 = vmatprep.subr.mxu0 0.0
        %875 = vmatpush1.msra.mxu0 0.0
        %876 = vmatprep.subr.mxu0 0.0
        %877 = vmatpush1.msra.mxu0 0.0
        %878 = vmatprep.subr.mxu0 0.0
        %879 = vmatpush1.msra.mxu0 0.0
        %880 = vmatprep.subr.mxu0 0.0
        %881 = vmatpush1.msra.mxu0 0.0
        %882 = vmatprep.subr.mxu0 0.0
        %883 = vmatpush1.msra.mxu0 0.0
        %884 = vmatprep.subr.mxu0 0.0
        %885 = vmatpush1.msra.mxu0 0.0
        %886 = vmatprep.subr.mxu0 0.0
        %887 = vmatpush1.msra.mxu0 0.0
        %888 = vmatprep.subr.mxu0 0.0
        %889 = vmatpush1.msra.mxu0 %v853
        %890 = vmatprep.subr.mxu0 0.0
        %891 = vmatpush2.msra.mxu0 0.0
        %892 = vmatprep.subr.mxu0 0.0
        %893 = vmatpush2.msra.mxu0 0.0
        %894 = vmatprep.subr.mxu0 0.0
        %895 = vmatpush2.msra.mxu0 0.0
        %896 = vmatprep.subr.mxu0 0.0
        %897 = vmatpush2.msra.mxu0 0.0
        %898 = vmatprep.subr.mxu0 0.0
        %899 = vmatpush2.msra.mxu0 0.0
        %900 = vmatprep.subr.mxu0 0.0
        %901 = vmatpush2.msra.mxu0 0.0
        %902 = vmatprep.subr.mxu0 0.0
        %903 = vmatpush2.msra.mxu0 0.0
        %904 = vmatprep.subr.mxu0 0.0
        %905 = vmatpush2.msra.mxu0 0.0
        %906 = vmatprep.subr.mxu0 0.0
        %907 = vmatpush2.msra.mxu0 0.0
        %908 = vmatprep.subr.mxu0 0.0
        %909 = vmatpush2.msra.mxu0 0.0
        %910 = vmatprep.subr.mxu0 0.0
        %911 = vmatpush2.msra.mxu0 0.0
        %912 = vmatprep.subr.mxu0 0.0
        %913 = vmatpush2.msra.mxu0 0.0
        %914 = vmatprep.subr.mxu0 0.0
        %915 = vmatpush2.msra.mxu0 0.0
        %916 = vmatprep.subr.mxu0 0.0
        %917 = vmatpush2.msra.mxu0 0.0
        %918 = vmatprep.subr.mxu0 0.0
        %919 = vmatpush2.msra.mxu0 0.0
        %920 = vmatprep.subr.mxu0 0.0
        %921 = vmatpush2.msra.mxu0 0.0
        %922 = vmatprep.mubr.f32.mxu0 0.0
        %923 = vmatmul.mubr.f32.gmra.mxu0 %v856
        %v924 = vpop.f32.mrf.mxu0
        %v925 = vadd.f32 0.0, %v924
        %v926 = vpop.f32.mrf.mxu0
        %927 = vdwg.mxu0
        %928 = vrot.lane.b32.xlu0 %v336, 64
        %v929 = vpop.permute.xlu0 %928
        %v932 = vsel %vm339, %v699, 0
        %934 = vmatprep.subr.mxu0 0.0
        %935 = vmatpush1.msra.mxu0 0.0
        %936 = vmatprep.subr.mxu0 0.0
        %937 = vmatpush1.msra.mxu0 0.0
        %938 = vmatprep.subr.mxu0 0.0
        %939 = vmatpush1.msra.mxu0 0.0
        %940 = vmatprep.subr.mxu0 0.0
        %941 = vmatpush1.msra.mxu0 0.0
        %942 = vmatprep.subr.mxu0 0.0
        %943 = vmatpush1.msra.mxu0 0.0
        %944 = vmatprep.subr.mxu0 0.0
        %945 = vmatpush1.msra.mxu0 0.0
        %946 = vmatprep.subr.mxu0 0.0
        %947 = vmatpush1.msra.mxu0 0.0
        %948 = vmatprep.subr.mxu0 0.0
        %949 = vmatpush1.msra.mxu0 0.0
        %950 = vmatprep.subr.mxu0 0.0
        %951 = vmatpush1.msra.mxu0 0.0
        %952 = vmatprep.subr.mxu0 0.0
        %953 = vmatpush1.msra.mxu0 0.0
        %954 = vmatprep.subr.mxu0 0.0
        %955 = vmatpush1.msra.mxu0 0.0
        %956 = vmatprep.subr.mxu0 0.0
        %957 = vmatpush1.msra.mxu0 0.0
        %958 = vmatprep.subr.mxu0 0.0
        %959 = vmatpush1.msra.mxu0 0.0
        %960 = vmatprep.subr.mxu0 0.0
        %961 = vmatpush1.msra.mxu0 0.0
        %962 = vmatprep.subr.mxu0 0.0
        %963 = vmatpush1.msra.mxu0 0.0
        %964 = vmatprep.subr.mxu0 0.0
        %965 = vmatpush1.msra.mxu0 %v929
        %966 = vmatprep.subr.mxu0 0.0
        %967 = vmatpush2.msra.mxu0 0.0
        %968 = vmatprep.subr.mxu0 0.0
        %969 = vmatpush2.msra.mxu0 0.0
        %970 = vmatprep.subr.mxu0 0.0
        %971 = vmatpush2.msra.mxu0 0.0
        %972 = vmatprep.subr.mxu0 0.0
        %973 = vmatpush2.msra.mxu0 0.0
        %974 = vmatprep.subr.mxu0 0.0
        %975 = vmatpush2.msra.mxu0 0.0
        %976 = vmatprep.subr.mxu0 0.0
        %977 = vmatpush2.msra.mxu0 0.0
        %978 = vmatprep.subr.mxu0 0.0
        %979 = vmatpush2.msra.mxu0 0.0
        %980 = vmatprep.subr.mxu0 0.0
        %981 = vmatpush2.msra.mxu0 0.0
        %982 = vmatprep.subr.mxu0 0.0
        %983 = vmatpush2.msra.mxu0 0.0
        %984 = vmatprep.subr.mxu0 0.0
        %985 = vmatpush2.msra.mxu0 0.0
        %986 = vmatprep.subr.mxu0 0.0
        %987 = vmatpush2.msra.mxu0 0.0
        %988 = vmatprep.subr.mxu0 0.0
        %989 = vmatpush2.msra.mxu0 0.0
        %990 = vmatprep.subr.mxu0 0.0
        %991 = vmatpush2.msra.mxu0 0.0
        %992 = vmatprep.subr.mxu0 0.0
        %993 = vmatpush2.msra.mxu0 0.0
        %994 = vmatprep.subr.mxu0 0.0
        %995 = vmatpush2.msra.mxu0 0.0
        %996 = vmatprep.subr.mxu0 0.0
        %997 = vmatpush2.msra.mxu0 0.0
        %998 = vmatprep.mubr.f32.mxu0 0.0
        %999 = vmatmul.mubr.f32.gmra.mxu0 %v932
        %v1000 = vpop.f32.mrf.mxu0
        %v1001 = vadd.f32 0.0, %v1000
        %v1002 = vpop.f32.mrf.mxu0
        %1003 = vdwg.mxu0
        %1005 = vrot.lane.b32.xlu0 %v849, 8
        %v1006 = vpop.permute.xlu0 %1005
        %1009 = vrot.lane.b32.xlu0 %v925, 16
        %v1010 = vpop.permute.xlu0 %1009
        %1013 = vrot.lane.b32.xlu0 %v1001, 24
        %v1014 = vpop.permute.xlu0 %1013
        %v1016 = vsel %vm339, %v773, %v1006
        %vm1017 = vcmask 130048
        %v1018 = vsel %vm1017, %v1016, %v1010
        %vm1019 = vcmask 195584
        %v1020 = vsel %vm1019, %v1018, %v1014
        %v1021 = vlaneseq
        %v1022 = vshrl.u32 %v1021, 7
        %v1023 = vsub.s32 1, %v1022
        %v1024 = vrot.slane %v251, %v1023
        %v1026 = vsel %vm256, %v1020, 0
        %1028 = vmatprep.subr.mxu0 0.0
        %1029 = vmatpush1.msra.mxu0 0.0
        %1030 = vmatprep.subr.mxu0 0.0
        %1031 = vmatpush1.msra.mxu0 0.0
        %1032 = vmatprep.subr.mxu0 0.0
        %1033 = vmatpush1.msra.mxu0 0.0
        %1034 = vmatprep.subr.mxu0 0.0
        %1035 = vmatpush1.msra.mxu0 0.0
        %1036 = vmatprep.subr.mxu0 0.0
        %1037 = vmatpush1.msra.mxu0 0.0
        %1038 = vmatprep.subr.mxu0 0.0
        %1039 = vmatpush1.msra.mxu0 0.0
        %1040 = vmatprep.subr.mxu0 0.0
        %1041 = vmatpush1.msra.mxu0 0.0
        %1042 = vmatprep.subr.mxu0 0.0
        %1043 = vmatpush1.msra.mxu0 0.0
        %1044 = vmatprep.subr.mxu0 0.0
        %1045 = vmatpush1.msra.mxu0 0.0
        %1046 = vmatprep.subr.mxu0 0.0
        %1047 = vmatpush1.msra.mxu0 0.0
        %1048 = vmatprep.subr.mxu0 0.0
        %1049 = vmatpush1.msra.mxu0 0.0
        %1050 = vmatprep.subr.mxu0 0.0
        %1051 = vmatpush1.msra.mxu0 0.0
        %1052 = vmatprep.subr.mxu0 0.0
        %1053 = vmatpush1.msra.mxu0 %v230
        %1054 = vmatprep.subr.mxu0 0.0
        %1055 = vmatpush1.msra.mxu0 %v229
        %1056 = vmatprep.subr.mxu0 0.0
        %1057 = vmatpush1.msra.mxu0 %v228
        %1058 = vmatprep.subr.mxu0 0.0
        %1059 = vmatpush1.msra.mxu0 %v227
        %1060 = vmatprep.subr.mxu0 0.0
        %1061 = vmatpush2.msra.mxu0 0.0
        %1062 = vmatprep.subr.mxu0 0.0
        %1063 = vmatpush2.msra.mxu0 0.0
        %1064 = vmatprep.subr.mxu0 0.0
        %1065 = vmatpush2.msra.mxu0 0.0
        %1066 = vmatprep.subr.mxu0 0.0
        %1067 = vmatpush2.msra.mxu0 0.0
        %1068 = vmatprep.subr.mxu0 0.0
        %1069 = vmatpush2.msra.mxu0 0.0
        %1070 = vmatprep.subr.mxu0 0.0
        %1071 = vmatpush2.msra.mxu0 0.0
        %1072 = vmatprep.subr.mxu0 0.0
        %1073 = vmatpush2.msra.mxu0 0.0
        %1074 = vmatprep.subr.mxu0 0.0
        %1075 = vmatpush2.msra.mxu0 0.0
        %1076 = vmatprep.subr.mxu0 0.0
        %1077 = vmatpush2.msra.mxu0 0.0
        %1078 = vmatprep.subr.mxu0 0.0
        %1079 = vmatpush2.msra.mxu0 0.0
        %1080 = vmatprep.subr.mxu0 0.0
        %1081 = vmatpush2.msra.mxu0 0.0
        %1082 = vmatprep.subr.mxu0 0.0
        %1083 = vmatpush2.msra.mxu0 0.0
        %1084 = vmatprep.subr.mxu0 0.0
        %1085 = vmatpush2.msra.mxu0 0.0
        %1086 = vmatprep.subr.mxu0 0.0
        %1087 = vmatpush2.msra.mxu0 0.0
        %1088 = vmatprep.subr.mxu0 0.0
        %1089 = vmatpush2.msra.mxu0 0.0
        %1090 = vmatprep.subr.mxu0 0.0
        %1091 = vmatpush2.msra.mxu0 0.0
        %1092 = vmatprep.mubr.f32.mxu0 0.0
        %1093 = vmatmul.mubr.f32.gmra.mxu0 %v1026
        %v1094 = vpop.f32.mrf.mxu0
        %v1095 = vadd.f32 %v1024, %v1094
        %v1096 = vpop.f32.mrf.mxu0
        %1097 = vdwg.mxu0
        %v1098 = vadd.f32 %v1095, %v220
        %v1099 = vsel %vm256, %v1098, 0.0
        %1100 = vadd.xlane.f32.xlu0 %v1099
        %v1101 = vpop.xlane.xlu0 %1100
        %v1102 = vrcp.pop 32.0
        %v1103 = vmul.f32 %v1101, %v1102
        %v1104 = vsub.f32 %v1098, %v1103
        %v1105 = vmul.f32 %v1104, %v1104
        %v1106 = vsel %vm256, %v1105, 0.0
        %1107 = vadd.xlane.f32.xlu0 %v1106
        %v1108 = vpop.xlane.xlu0 %1107
        %v1109 = vmul.f32 %v1108, %v1102
        %v1110 = vadd.f32 %v1109, 1e-05
        %v1111 = vrsqrt.pop %v1110
        %v1112 = vmul.f32 %v1104, %v1111
        %v1113 = vlaneseq
        %v1114 = vshrl.u32 %v1113, 7
        %v1115 = vsub.s32 2, %v1114
        %v1116 = vrot.slane %v251, %v1115
        %v1118 = vsel %vm256, %v1112, 0
        %1120 = vmatprep.subr.mxu0 0.0
        %1121 = vmatpush1.msra.mxu0 0.0
        %1122 = vmatprep.subr.mxu0 0.0
        %1123 = vmatpush1.msra.mxu0 0.0
        %1124 = vmatprep.subr.mxu0 0.0
        %1125 = vmatpush1.msra.mxu0 0.0
        %1126 = vmatprep.subr.mxu0 0.0
        %1127 = vmatpush1.msra.mxu0 0.0
        %1128 = vmatprep.subr.mxu0 0.0
        %1129 = vmatpush1.msra.mxu0 0.0
        %1130 = vmatprep.subr.mxu0 0.0
        %1131 = vmatpush1.msra.mxu0 0.0
        %1132 = vmatprep.subr.mxu0 0.0
        %1133 = vmatpush1.msra.mxu0 0.0
        %1134 = vmatprep.subr.mxu0 0.0
        %1135 = vmatpush1.msra.mxu0 0.0
        %1136 = vmatprep.subr.mxu0 0.0
        %1137 = vmatpush1.msra.mxu0 0.0
        %1138 = vmatprep.subr.mxu0 0.0
        %1139 = vmatpush1.msra.mxu0 0.0
        %1140 = vmatprep.subr.mxu0 0.0
        %1141 = vmatpush1.msra.mxu0 0.0
        %1142 = vmatprep.subr.mxu0 0.0
        %1143 = vmatpush1.msra.mxu0 0.0
        %1144 = vmatprep.subr.mxu0 0.0
        %1145 = vmatpush1.msra.mxu0 %v234
        %1146 = vmatprep.subr.mxu0 0.0
        %1147 = vmatpush1.msra.mxu0 %v233
        %1148 = vmatprep.subr.mxu0 0.0
        %1149 = vmatpush1.msra.mxu0 %v232
        %1150 = vmatprep.subr.mxu0 0.0
        %1151 = vmatpush1.msra.mxu0 %v231
        %1152 = vmatprep.subr.mxu0 0.0
        %1153 = vmatpush2.msra.mxu0 0.0
        %1154 = vmatprep.subr.mxu0 0.0
        %1155 = vmatpush2.msra.mxu0 0.0
        %1156 = vmatprep.subr.mxu0 0.0
        %1157 = vmatpush2.msra.mxu0 0.0
        %1158 = vmatprep.subr.mxu0 0.0
        %1159 = vmatpush2.msra.mxu0 0.0
        %1160 = vmatprep.subr.mxu0 0.0
        %1161 = vmatpush2.msra.mxu0 0.0
        %1162 = vmatprep.subr.mxu0 0.0
        %1163 = vmatpush2.msra.mxu0 0.0
        %1164 = vmatprep.subr.mxu0 0.0
        %1165 = vmatpush2.msra.mxu0 0.0
        %1166 = vmatprep.subr.mxu0 0.0
        %1167 = vmatpush2.msra.mxu0 0.0
        %1168 = vmatprep.subr.mxu0 0.0
        %1169 = vmatpush2.msra.mxu0 0.0
        %1170 = vmatprep.subr.mxu0 0.0
        %1171 = vmatpush2.msra.mxu0 0.0
        %1172 = vmatprep.subr.mxu0 0.0
        %1173 = vmatpush2.msra.mxu0 0.0
        %1174 = vmatprep.subr.mxu0 0.0
        %1175 = vmatpush2.msra.mxu0 0.0
        %1176 = vmatprep.subr.mxu0 0.0
        %1177 = vmatpush2.msra.mxu0 0.0
        %1178 = vmatprep.subr.mxu0 0.0
        %1179 = vmatpush2.msra.mxu0 0.0
        %1180 = vmatprep.subr.mxu0 0.0
        %1181 = vmatpush2.msra.mxu0 0.0
        %1182 = vmatprep.subr.mxu0 0.0
        %1183 = vmatpush2.msra.mxu0 0.0
        %1184 = vmatprep.mubr.f32.mxu0 0.0
        %1185 = vmatmul.mubr.f32.gmra.mxu0 %v1118
        %v1186 = vpop.f32.mrf.mxu0
        %v1187 = vadd.f32 %v1116, %v1186
        %v1188 = vpop.f32.mrf.mxu0
        %1189 = vdwg.mxu0
        %v1190 = vmax.f32 %v1187, 0.0
        %v1191 = vlaneseq
        %v1192 = vshrl.u32 %v1191, 7
        %v1193 = vsub.s32 3, %v1192
        %v1194 = vrot.slane %v251, %v1193
        %1195 = vmatprep.subr.mxu0 0.0
        %1196 = vmatpush1.msra.mxu0 %v250
        %1197 = vmatprep.subr.mxu0 0.0
        %1198 = vmatpush1.msra.mxu0 %v249
        %1199 = vmatprep.subr.mxu0 0.0
        %1200 = vmatpush1.msra.mxu0 %v248
        %1201 = vmatprep.subr.mxu0 0.0
        %1202 = vmatpush1.msra.mxu0 %v247
        %1203 = vmatprep.subr.mxu0 0.0
        %1204 = vmatpush1.msra.mxu0 %v246
        %1205 = vmatprep.subr.mxu0 0.0
        %1206 = vmatpush1.msra.mxu0 %v245
        %1207 = vmatprep.subr.mxu0 0.0
        %1208 = vmatpush1.msra.mxu0 %v244
        %1209 = vmatprep.subr.mxu0 0.0
        %1210 = vmatpush1.msra.mxu0 %v243
        %1211 = vmatprep.subr.mxu0 0.0
        %1212 = vmatpush1.msra.mxu0 %v242
        %1213 = vmatprep.subr.mxu0 0.0
        %1214 = vmatpush1.msra.mxu0 %v241
        %1215 = vmatprep.subr.mxu0 0.0
        %1216 = vmatpush1.msra.mxu0 %v240
        %1217 = vmatprep.subr.mxu0 0.0
        %1218 = vmatpush1.msra.mxu0 %v239
        %1219 = vmatprep.subr.mxu0 0.0
        %1220 = vmatpush1.msra.mxu0 %v238
        %1221 = vmatprep.subr.mxu0 0.0
        %1222 = vmatpush1.msra.mxu0 %v237
        %1223 = vmatprep.subr.mxu0 0.0
        %1224 = vmatpush1.msra.mxu0 %v236
        %1225 = vmatprep.subr.mxu0 0.0
        %1226 = vmatpush1.msra.mxu0 %v235
        %1227 = vmatprep.subr.mxu0 0.0
        %1228 = vmatpush2.msra.mxu0 0.0
        %1229 = vmatprep.subr.mxu0 0.0
        %1230 = vmatpush2.msra.mxu0 0.0
        %1231 = vmatprep.subr.mxu0 0.0
        %1232 = vmatpush2.msra.mxu0 0.0
        %1233 = vmatprep.subr.mxu0 0.0
        %1234 = vmatpush2.msra.mxu0 0.0
        %1235 = vmatprep.subr.mxu0 0.0
        %1236 = vmatpush2.msra.mxu0 0.0
        %1237 = vmatprep.subr.mxu0 0.0
        %1238 = vmatpush2.msra.mxu0 0.0
        %1239 = vmatprep.subr.mxu0 0.0
        %1240 = vmatpush2.msra.mxu0 0.0
        %1241 = vmatprep.subr.mxu0 0.0
        %1242 = vmatpush2.msra.mxu0 0.0
        %1243 = vmatprep.subr.mxu0 0.0
        %1244 = vmatpush2.msra.mxu0 0.0
        %1245 = vmatprep.subr.mxu0 0.0
        %1246 = vmatpush2.msra.mxu0 0.0
        %1247 = vmatprep.subr.mxu0 0.0
        %1248 = vmatpush2.msra.mxu0 0.0
        %1249 = vmatprep.subr.mxu0 0.0
        %1250 = vmatpush2.msra.mxu0 0.0
        %1251 = vmatprep.subr.mxu0 0.0
        %1252 = vmatpush2.msra.mxu0 0.0
        %1253 = vmatprep.subr.mxu0 0.0
        %1254 = vmatpush2.msra.mxu0 0.0
        %1255 = vmatprep.subr.mxu0 0.0
        %1256 = vmatpush2.msra.mxu0 0.0
        %1257 = vmatprep.subr.mxu0 0.0
        %1258 = vmatpush2.msra.mxu0 0.0
        %1259 = vmatprep.mubr.f32.mxu0 0.0
        %1260 = vmatmul.mubr.f32.gmra.mxu0 %v1190
        %v1261 = vpop.f32.mrf.mxu0
        %v1262 = vadd.f32 %v1194, %v1261
        %v1263 = vpop.f32.mrf.mxu0
        %1264 = vdwg.mxu0
        %1265 = vst.msk [vmem:[%s219] sm:$0xff] %vm256, %v1020
        %v1266 = vadd.f32 %v220, %v1262
        %v1267 = vsel %vm256, %v1266, 0.0
        %1268 = vadd.xlane.f32.xlu0 %v1267
        %v1269 = vpop.xlane.xlu0 %1268
        %v1270 = vmul.f32 %v1269, %v1102
        %v1271 = vsub.f32 %v1266, %v1270
        %v1272 = vmul.f32 %v1271, %v1271
        %v1273 = vsel %vm256, %v1272, 0.0
        %1274 = vadd.xlane.f32.xlu0 %v1273
        %v1275 = vpop.xlane.xlu0 %1274
        %v1276 = vmul.f32 %v1275, %v1102
        %v1277 = vadd.f32 %v1276, 1e-05
        %v1278 = vrsqrt.pop %v1277
        %v1279 = vmul.f32 %v1271, %v1278
        %s1280 = scalar_lea.vmem %s2, 232
        %v1281 = vld [vmem:[%s1280] sm:$0xff]
        %v1282 = vld [vmem:[%s1280 + $0x8] sm:$0xff]
        %v1283 = vld [vmem:[%s1280 + $0x10] sm:$0xff]
        %v1284 = vld [vmem:[%s1280 + $0x18] sm:$0xff]
        %v1285 = vld [vmem:[%s1280 + $0x20] sm:$0xff]
        %v1286 = vld [vmem:[%s1280 + $0x28] sm:$0xff]
        %v1287 = vld [vmem:[%s1280 + $0x30] sm:$0xff]
        %v1288 = vld [vmem:[%s1280 + $0x38] sm:$0xff]
        %v1289 = vld [vmem:[%s1280 + $0x40] sm:$0xff]
        %v1290 = vld [vmem:[%s1280 + $0x48] sm:$0xff]
        %v1291 = vld [vmem:[%s1280 + $0x50] sm:$0xff]
        %v1292 = vld [vmem:[%s1280 + $0x58] sm:$0xff]
        %v1293 = vld [vmem:[%s1280 + $0x60] sm:$0xff]
        %v1294 = vld [vmem:[%s1280 + $0x68] sm:$0xff]
        %v1295 = vld [vmem:[%s1280 + $0x70] sm:$0xff]
        %v1296 = vld [vmem:[%s1280 + $0x78] sm:$0xff]
        %v1297 = vld [vmem:[%s1280 + $0x80] sm:$0xff]
        %v1298 = vld [vmem:[%s1280 + $0x88] sm:$0xff]
        %v1299 = vld [vmem:[%s1280 + $0x90] sm:$0xff]
        %v1300 = vld [vmem:[%s1280 + $0x98] sm:$0xff]
        %v1301 = vld [vmem:[%s1280 + $0xa0] sm:$0xff]
        %v1302 = vld [vmem:[%s1280 + $0xa8] sm:$0xff]
        %v1303 = vld [vmem:[%s1280 + $0xb0] sm:$0xff]
        %v1304 = vld [vmem:[%s1280 + $0xb8] sm:$0xff]
        %v1305 = vld [vmem:[%s1280 + $0xc0] sm:$0xff]
        %v1306 = vld [vmem:[%s1280 + $0xc8] sm:$0xff]
        %v1307 = vld [vmem:[%s1280 + $0xd0] sm:$0xff]
        %v1308 = vld [vmem:[%s1280 + $0xd8] sm:$0xff]
        %v1309 = vld [vmem:[%s1280 + $0xe0] sm:$0xff]
        %v1310 = vlaneseq
        %v1311 = vshrl.u32 %v1310, 7
        %v1312 = vsub.s32 0, %v1311
        %v1313 = vrot.slane %v1309, %v1312
        %v1315 = vsel %vm256, %v1279, 0
        %1317 = vmatprep.subr.mxu0 0.0
        %1318 = vmatpush1.msra.mxu0 0.0
        %1319 = vmatprep.subr.mxu0 0.0
        %1320 = vmatpush1.msra.mxu0 0.0
        %1321 = vmatprep.subr.mxu0 0.0
        %1322 = vmatpush1.msra.mxu0 0.0
        %1323 = vmatprep.subr.mxu0 0.0
        %1324 = vmatpush1.msra.mxu0 0.0
        %1325 = vmatprep.subr.mxu0 0.0
        %1326 = vmatpush1.msra.mxu0 0.0
        %1327 = vmatprep.subr.mxu0 0.0
        %1328 = vmatpush1.msra.mxu0 0.0
        %1329 = vmatprep.subr.mxu0 0.0
        %1330 = vmatpush1.msra.mxu0 0.0
        %1331 = vmatprep.subr.mxu0 0.0
        %1332 = vmatpush1.msra.mxu0 0.0
        %1333 = vmatprep.subr.mxu0 0.0
        %1334 = vmatpush1.msra.mxu0 0.0
        %1335 = vmatprep.subr.mxu0 0.0
        %1336 = vmatpush1.msra.mxu0 0.0
        %1337 = vmatprep.subr.mxu0 0.0
        %1338 = vmatpush1.msra.mxu0 0.0
        %1339 = vmatprep.subr.mxu0 0.0
        %1340 = vmatpush1.msra.mxu0 0.0
        %1341 = vmatprep.subr.mxu0 0.0
        %1342 = vmatpush1.msra.mxu0 %v1284
        %1343 = vmatprep.subr.mxu0 0.0
        %1344 = vmatpush1.msra.mxu0 %v1283
        %1345 = vmatprep.subr.mxu0 0.0
        %1346 = vmatpush1.msra.mxu0 %v1282
        %1347 = vmatprep.subr.mxu0 0.0
        %1348 = vmatpush1.msra.mxu0 %v1281
        %1349 = vmatprep.subr.mxu0 0.0
        %1350 = vmatpush2.msra.mxu0 0.0
        %1351 = vmatprep.subr.mxu0 0.0
        %1352 = vmatpush2.msra.mxu0 0.0
        %1353 = vmatprep.subr.mxu0 0.0
        %1354 = vmatpush2.msra.mxu0 0.0
        %1355 = vmatprep.subr.mxu0 0.0
        %1356 = vmatpush2.msra.mxu0 0.0
        %1357 = vmatprep.subr.mxu0 0.0
        %1358 = vmatpush2.msra.mxu0 0.0
        %1359 = vmatprep.subr.mxu0 0.0
        %1360 = vmatpush2.msra.mxu0 0.0
        %1361 = vmatprep.subr.mxu0 0.0
        %1362 = vmatpush2.msra.mxu0 0.0
        %1363 = vmatprep.subr.mxu0 0.0
        %1364 = vmatpush2.msra.mxu0 0.0
        %1365 = vmatprep.subr.mxu0 0.0
        %1366 = vmatpush2.msra.mxu0 0.0
        %1367 = vmatprep.subr.mxu0 0.0
        %1368 = vmatpush2.msra.mxu0 0.0
        %1369 = vmatprep.subr.mxu0 0.0
        %1370 = vmatpush2.msra.mxu0 0.0
        %1371 = vmatprep.subr.mxu0 0.0
        %1372 = vmatpush2.msra.mxu0 0.0
        %1373 = vmatprep.subr.mxu0 0.0
        %1374 = vmatpush2.msra.mxu0 0.0
        %1375 = vmatprep.subr.mxu0 0.0
        %1376 = vmatpush2.msra.mxu0 0.0
        %1377 = vmatprep.subr.mxu0 0.0
        %1378 = vmatpush2.msra.mxu0 0.0
        %1379 = vmatprep.subr.mxu0 0.0
        %1380 = vmatpush2.msra.mxu0 0.0
        %1381 = vmatprep.mubr.f32.mxu0 0.0
        %1382 = vmatmul.mubr.f32.gmra.mxu0 %v1315
        %v1383 = vpop.f32.mrf.mxu0
        %v1384 = vadd.f32 %v1313, %v1383
        %v1385 = vpop.f32.mrf.mxu0
        %1386 = vdwg.mxu0
        %1388 = vrot.lane.b32.xlu0 %v1384, 120
        %v1389 = vpop.permute.xlu0 %1388
        %1390 = vrot.lane.b32.xlu0 %v1384, 112
        %v1391 = vpop.permute.xlu0 %1390
        %1392 = vrot.lane.b32.xlu0 %v1384, 104
        %v1393 = vpop.permute.xlu0 %1392
        %1394 = vrot.lane.b32.xlu0 %v1384, 96
        %v1395 = vpop.permute.xlu0 %1394
        %v1396 = vsel %vm339, %v1384, 0
        %v1398 = vsel %vm339, %v1395, 0
        %1400 = vmatprep.subr.mxu0 0.0
        %1401 = vmatpush1.xpose.msra.mxu0 0.0
        %1402 = vmatprep.subr.mxu0 0.0
        %1403 = vmatpush1.xpose.msra.mxu0 0.0
        %1404 = vmatprep.subr.mxu0 0.0
        %1405 = vmatpush1.xpose.msra.mxu0 0.0
        %1406 = vmatprep.subr.mxu0 0.0
        %1407 = vmatpush1.xpose.msra.mxu0 0.0
        %1408 = vmatprep.subr.mxu0 0.0
        %1409 = vmatpush1.xpose.msra.mxu0 0.0
        %1410 = vmatprep.subr.mxu0 0.0
        %1411 = vmatpush1.xpose.msra.mxu0 0.0
        %1412 = vmatprep.subr.mxu0 0.0
        %1413 = vmatpush1.xpose.msra.mxu0 0.0
        %1414 = vmatprep.subr.mxu0 0.0
        %1415 = vmatpush1.xpose.msra.mxu0 0.0
        %1416 = vmatprep.subr.mxu0 0.0
        %1417 = vmatpush1.xpose.msra.mxu0 0.0
        %1418 = vmatprep.subr.mxu0 0.0
        %1419 = vmatpush1.xpose.msra.mxu0 0.0
        %1420 = vmatprep.subr.mxu0 0.0
        %1421 = vmatpush1.xpose.msra.mxu0 0.0
        %1422 = vmatprep.subr.mxu0 0.0
        %1423 = vmatpush1.xpose.msra.mxu0 0.0
        %1424 = vmatprep.subr.mxu0 0.0
        %1425 = vmatpush1.xpose.msra.mxu0 0.0
        %1426 = vmatprep.subr.mxu0 0.0
        %1427 = vmatpush1.xpose.msra.mxu0 0.0
        %1428 = vmatprep.subr.mxu0 0.0
        %1429 = vmatpush1.xpose.msra.mxu0 0.0
        %1430 = vmatprep.subr.mxu0 0.0
        %1431 = vmatpush1.xpose.msra.mxu0 %v1398
        %1432 = vmatprep.subr.mxu0 0.0
        %1433 = vmatpush2.xpose.msra.mxu0 0.0
        %1434 = vmatprep.subr.mxu0 0.0
        %1435 = vmatpush2.xpose.msra.mxu0 0.0
        %1436 = vmatprep.subr.mxu0 0.0
        %1437 = vmatpush2.xpose.msra.mxu0 0.0
        %1438 = vmatprep.subr.mxu0 0.0
        %1439 = vmatpush2.xpose.msra.mxu0 0.0
        %1440 = vmatprep.subr.mxu0 0.0
        %1441 = vmatpush2.xpose.msra.mxu0 0.0
        %1442 = vmatprep.subr.mxu0 0.0
        %1443 = vmatpush2.xpose.msra.mxu0 0.0
        %1444 = vmatprep.subr.mxu0 0.0
        %1445 = vmatpush2.xpose.msra.mxu0 0.0
        %1446 = vmatprep.subr.mxu0 0.0
        %1447 = vmatpush2.xpose.msra.mxu0 0.0
        %1448 = vmatprep.subr.mxu0 0.0
        %1449 = vmatpush2.xpose.msra.mxu0 0.0
        %1450 = vmatprep.subr.mxu0 0.0
        %1451 = vmatpush2.xpose.msra.mxu0 0.0
        %1452 = vmatprep.subr.mxu0 0.0
        %1453 = vmatpush2.xpose.msra.mxu0 0.0
        %1454 = vmatprep.subr.mxu0 0.0
        %1455 = vmatpush2.xpose.msra.mxu0 0.0
        %1456 = vmatprep.subr.mxu0 0.0
        %1457 = vmatpush2.xpose.msra.mxu0 0.0
        %1458 = vmatprep.subr.mxu0 0.0
        %1459 = vmatpush2.xpose.msra.mxu0 0.0
        %1460 = vmatprep.subr.mxu0 0.0
        %1461 = vmatpush2.xpose.msra.mxu0 0.0
        %1462 = vmatprep.subr.mxu0 0.0
        %1463 = vmatpush2.xpose.msra.mxu0 0.0
        %1464 = vmatprep.mubr.f32.mxu0 0.0
        %1465 = vmatmul.mubr.f32.gmra.mxu0 %v1396
        %v1466 = vpop.f32.mrf.mxu0
        %v1467 = vadd.f32 0.0, %v1466
        %v1468 = vpop.f32.mrf.mxu0
        %1469 = vdwg.mxu0
        %1470 = vrot.lane.b32.xlu0 %v1389, 96
        %v1471 = vpop.permute.xlu0 %1470
        %v1472 = vsel %vm339, %v1389, 0
        %v1474 = vsel %vm339, %v1471, 0
        %1476 = vmatprep.subr.mxu0 0.0
        %1477 = vmatpush1.xpose.msra.mxu0 0.0
        %1478 = vmatprep.subr.mxu0 0.0
        %1479 = vmatpush1.xpose.msra.mxu0 0.0
        %1480 = vmatprep.subr.mxu0 0.0
        %1481 = vmatpush1.xpose.msra.mxu0 0.0
        %1482 = vmatprep.subr.mxu0 0.0
        %1483 = vmatpush1.xpose.msra.mxu0 0.0
        %1484 = vmatprep.subr.mxu0 0.0
        %1485 = vmatpush1.xpose.msra.mxu0 0.0
        %1486 = vmatprep.subr.mxu0 0.0
        %1487 = vmatpush1.xpose.msra.mxu0 0.0
        %1488 = vmatprep.subr.mxu0 0.0
        %1489 = vmatpush1.xpose.msra.mxu0 0.0
        %1490 = vmatprep.subr.mxu0 0.0
        %1491 = vmatpush1.xpose.msra.mxu0 0.0
        %1492 = vmatprep.subr.mxu0 0.0
        %1493 = vmatpush1.xpose.msra.mxu0 0.0
        %1494 = vmatprep.subr.mxu0 0.0
        %1495 = vmatpush1.xpose.msra.mxu0 0.0
        %1496 = vmatprep.subr.mxu0 0.0
        %1497 = vmatpush1.xpose.msra.mxu0 0.0
        %1498 = vmatprep.subr.mxu0 0.0
        %1499 = vmatpush1.xpose.msra.mxu0 0.0
        %1500 = vmatprep.subr.mxu0 0.0
        %1501 = vmatpush1.xpose.msra.mxu0 0.0
        %1502 = vmatprep.subr.mxu0 0.0
        %1503 = vmatpush1.xpose.msra.mxu0 0.0
        %1504 = vmatprep.subr.mxu0 0.0
        %1505 = vmatpush1.xpose.msra.mxu0 0.0
        %1506 = vmatprep.subr.mxu0 0.0
        %1507 = vmatpush1.xpose.msra.mxu0 %v1474
        %1508 = vmatprep.subr.mxu0 0.0
        %1509 = vmatpush2.xpose.msra.mxu0 0.0
        %1510 = vmatprep.subr.mxu0 0.0
        %1511 = vmatpush2.xpose.msra.mxu0 0.0
        %1512 = vmatprep.subr.mxu0 0.0
        %1513 = vmatpush2.xpose.msra.mxu0 0.0
        %1514 = vmatprep.subr.mxu0 0.0
        %1515 = vmatpush2.xpose.msra.mxu0 0.0
        %1516 = vmatprep.subr.mxu0 0.0
        %1517 = vmatpush2.xpose.msra.mxu0 0.0
        %1518 = vmatprep.subr.mxu0 0.0
        %1519 = vmatpush2.xpose.msra.mxu0 0.0
        %1520 = vmatprep.subr.mxu0 0.0
        %1521 = vmatpush2.xpose.msra.mxu0 0.0
        %1522 = vmatprep.subr.mxu0 0.0
        %1523 = vmatpush2.xpose.msra.mxu0 0.0
        %1524 = vmatprep.subr.mxu0 0.0
        %1525 = vmatpush2.xpose.msra.mxu0 0.0
        %1526 = vmatprep.subr.mxu0 0.0
        %1527 = vmatpush2.xpose.msra.mxu0 0.0
        %1528 = vmatprep.subr.mxu0 0.0
        %1529 = vmatpush2.xpose.msra.mxu0 0.0
        %1530 = vmatprep.subr.mxu0 0.0
        %1531 = vmatpush2.xpose.msra.mxu0 0.0
        %1532 = vmatprep.subr.mxu0 0.0
        %1533 = vmatpush2.xpose.msra.mxu0 0.0
        %1534 = vmatprep.subr.mxu0 0.0
        %1535 = vmatpush2.xpose.msra.mxu0 0.0
        %1536 = vmatprep.subr.mxu0 0.0
        %1537 = vmatpush2.xpose.msra.mxu0 0.0
        %1538 = vmatprep.subr.mxu0 0.0
        %1539 = vmatpush2.xpose.msra.mxu0 0.0
        %1540 = vmatprep.mubr.f32.mxu0 0.0
        %1541 = vmatmul.mubr.f32.gmra.mxu0 %v1472
        %v1542 = vpop.f32.mrf.mxu0
        %v1543 = vadd.f32 0.0, %v1542
        %v1544 = vpop.f32.mrf.mxu0
        %1545 = vdwg.mxu0
        %1546 = vrot.lane.b32.xlu0 %v1391, 96
        %v1547 = vpop.permute.xlu0 %1546
        %v1548 = vsel %vm339, %v1391, 0
        %v1550 = vsel %vm339, %v1547, 0
        %1552 = vmatprep.subr.mxu0 0.0
        %1553 = vmatpush1.xpose.msra.mxu0 0.0
        %1554 = vmatprep.subr.mxu0 0.0
        %1555 = vmatpush1.xpose.msra.mxu0 0.0
        %1556 = vmatprep.subr.mxu0 0.0
        %1557 = vmatpush1.xpose.msra.mxu0 0.0
        %1558 = vmatprep.subr.mxu0 0.0
        %1559 = vmatpush1.xpose.msra.mxu0 0.0
        %1560 = vmatprep.subr.mxu0 0.0
        %1561 = vmatpush1.xpose.msra.mxu0 0.0
        %1562 = vmatprep.subr.mxu0 0.0
        %1563 = vmatpush1.xpose.msra.mxu0 0.0
        %1564 = vmatprep.subr.mxu0 0.0
        %1565 = vmatpush1.xpose.msra.mxu0 0.0
        %1566 = vmatprep.subr.mxu0 0.0
        %1567 = vmatpush1.xpose.msra.mxu0 0.0
        %1568 = vmatprep.subr.mxu0 0.0
        %1569 = vmatpush1.xpose.msra.mxu0 0.0
        %1570 = vmatprep.subr.mxu0 0.0
        %1571 = vmatpush1.xpose.msra.mxu0 0.0
        %1572 = vmatprep.subr.mxu0 0.0
        %1573 = vmatpush1.xpose.msra.mxu0 0.0
        %1574 = vmatprep.subr.mxu0 0.0
        %1575 = vmatpush1.xpose.msra.mxu0 0.0
        %1576 = vmatprep.subr.mxu0 0.0
        %1577 = vmatpush1.xpose.msra.mxu0 0.0
        %1578 = vmatprep.subr.mxu0 0.0
        %1579 = vmatpush1.xpose.msra.mxu0 0.0
        %1580 = vmatprep.subr.mxu0 0.0
        %1581 = vmatpush1.xpose.msra.mxu0 0.0
        %1582 = vmatprep.subr.mxu0 0.0
        %1583 = vmatpush1.xpose.msra.mxu0 %v1550
        %1584 = vmatprep.subr.mxu0 0.0
        %1585 = vmatpush2.xpose.msra.mxu0 0.0
        %1586 = vmatprep.subr.mxu0 0.0
        %1587 = vmatpush2.xpose.msra.mxu0 0.0
        %1588 = vmatprep.subr.mxu0 0.0
        %1589 = vmatpush2.xpose.msra.mxu0 0.0
        %1590 = vmatprep.subr.mxu0 0.0
        %1591 = vmatpush2.xpose.msra.mxu0 0.0
        %1592 = vmatprep.subr.mxu0 0.0
        %1593 = vmatpush2.xpose.msra.mxu0 0.0
        %1594 = vmatprep.subr.mxu0 0.0
        %1595 = vmatpush2.xpose.msra.mxu0 0.0
        %1596 = vmatprep.subr.mxu0 0.0
        %1597 = vmatpush2.xpose.msra.mxu0 0.0
        %1598 = vmatprep.subr.mxu0 0.0
        %1599 = vmatpush2.xpose.msra.mxu0 0.0
        %1600 = vmatprep.subr.mxu0 0.0
        %1601 = vmatpush2.xpose.msra.mxu0 0.0
        %1602 = vmatprep.subr.mxu0 0.0
        %1603 = vmatpush2.xpose.msra.mxu0 0.0
        %1604 = vmatprep.subr.mxu0 0.0
        %1605 = vmatpush2.xpose.msra.mxu0 0.0
        %1606 = vmatprep.subr.mxu0 0.0
        %1607 = vmatpush2.xpose.msra.mxu0 0.0
        %1608 = vmatprep.subr.mxu0 0.0
        %1609 = vmatpush2.xpose.msra.mxu0 0.0
        %1610 = vmatprep.subr.mxu0 0.0
        %1611 = vmatpush2.xpose.msra.mxu0 0.0
        %1612 = vmatprep.subr.mxu0 0.0
        %1613 = vmatpush2.xpose.msra.mxu0 0.0
        %1614 = vmatprep.subr.mxu0 0.0
        %1615 = vmatpush2.xpose.msra.mxu0 0.0
        %1616 = vmatprep.mubr.f32.mxu0 0.0
        %1617 = vmatmul.mubr.f32.gmra.mxu0 %v1548
        %v1618 = vpop.f32.mrf.mxu0
        %v1619 = vadd.f32 0.0, %v1618
        %v1620 = vpop.f32.mrf.mxu0
        %1621 = vdwg.mxu0
        %1622 = vrot.lane.b32.xlu0 %v1393, 96
        %v1623 = vpop.permute.xlu0 %1622
        %v1624 = vsel %vm339, %v1393, 0
        %v1626 = vsel %vm339, %v1623, 0
        %1628 = vmatprep.subr.mxu0 0.0
        %1629 = vmatpush1.xpose.msra.mxu0 0.0
        %1630 = vmatprep.subr.mxu0 0.0
        %1631 = vmatpush1.xpose.msra.mxu0 0.0
        %1632 = vmatprep.subr.mxu0 0.0
        %1633 = vmatpush1.xpose.msra.mxu0 0.0
        %1634 = vmatprep.subr.mxu0 0.0
        %1635 = vmatpush1.xpose.msra.mxu0 0.0
        %1636 = vmatprep.subr.mxu0 0.0
        %1637 = vmatpush1.xpose.msra.mxu0 0.0
        %1638 = vmatprep.subr.mxu0 0.0
        %1639 = vmatpush1.xpose.msra.mxu0 0.0
        %1640 = vmatprep.subr.mxu0 0.0
        %1641 = vmatpush1.xpose.msra.mxu0 0.0
        %1642 = vmatprep.subr.mxu0 0.0
        %1643 = vmatpush1.xpose.msra.mxu0 0.0
        %1644 = vmatprep.subr.mxu0 0.0
        %1645 = vmatpush1.xpose.msra.mxu0 0.0
        %1646 = vmatprep.subr.mxu0 0.0
        %1647 = vmatpush1.xpose.msra.mxu0 0.0
        %1648 = vmatprep.subr.mxu0 0.0
        %1649 = vmatpush1.xpose.msra.mxu0 0.0
        %1650 = vmatprep.subr.mxu0 0.0
        %1651 = vmatpush1.xpose.msra.mxu0 0.0
        %1652 = vmatprep.subr.mxu0 0.0
        %1653 = vmatpush1.xpose.msra.mxu0 0.0
        %1654 = vmatprep.subr.mxu0 0.0
        %1655 = vmatpush1.xpose.msra.mxu0 0.0
        %1656 = vmatprep.subr.mxu0 0.0
        %1657 = vmatpush1.xpose.msra.mxu0 0.0
        %1658 = vmatprep.subr.mxu0 0.0
        %1659 = vmatpush1.xpose.msra.mxu0 %v1626
        %1660 = vmatprep.subr.mxu0 0.0
        %1661 = vmatpush2.xpose.msra.mxu0 0.0
        %1662 = vmatprep.subr.mxu0 0.0
        %1663 = vmatpush2.xpose.msra.mxu0 0.0
        %1664 = vmatprep.subr.mxu0 0.0
        %1665 = vmatpush2.xpose.msra.mxu0 0.0
        %1666 = vmatprep.subr.mxu0 0.0
        %1667 = vmatpush2.xpose.msra.mxu0 0.0
        %1668 = vmatprep.subr.mxu0 0.0
        %1669 = vmatpush2.xpose.msra.mxu0 0.0
        %1670 = vmatprep.subr.mxu0 0.0
        %1671 = vmatpush2.xpose.msra.mxu0 0.0
        %1672 = vmatprep.subr.mxu0 0.0
        %1673 = vmatpush2.xpose.msra.mxu0 0.0
        %1674 = vmatprep.subr.mxu0 0.0
        %1675 = vmatpush2.xpose.msra.mxu0 0.0
        %1676 = vmatprep.subr.mxu0 0.0
        %1677 = vmatpush2.xpose.msra.mxu0 0.0
        %1678 = vmatprep.subr.mxu0 0.0
        %1679 = vmatpush2.xpose.msra.mxu0 0.0
        %1680 = vmatprep.subr.mxu0 0.0
        %1681 = vmatpush2.xpose.msra.mxu0 0.0
        %1682 = vmatprep.subr.mxu0 0.0
        %1683 = vmatpush2.xpose.msra.mxu0 0.0
        %1684 = vmatprep.subr.mxu0 0.0
        %1685 = vmatpush2.xpose.msra.mxu0 0.0
        %1686 = vmatprep.subr.mxu0 0.0
        %1687 = vmatpush2.xpose.msra.mxu0 0.0
        %1688 = vmatprep.subr.mxu0 0.0
        %1689 = vmatpush2.xpose.msra.mxu0 0.0
        %1690 = vmatprep.subr.mxu0 0.0
        %1691 = vmatpush2.xpose.msra.mxu0 0.0
        %1692 = vmatprep.mubr.f32.mxu0 0.0
        %1693 = vmatmul.mubr.f32.gmra.mxu0 %v1624
        %v1694 = vpop.f32.mrf.mxu0
        %v1695 = vadd.f32 0.0, %v1694
        %v1696 = vpop.f32.mrf.mxu0
        %1697 = vdwg.mxu0
        %v1698 = vmul.f32 %v1467, 0.35355338
        %v1699 = vmul.f32 %v1543, 0.35355338
        %v1700 = vmul.f32 %v1619, 0.35355338
        %v1701 = vmul.f32 %v1695, 0.35355338
        %v1702 = vsel %vm651, -1e+09, %v1698
        %v1703 = vsel %vm651, -1e+09, %v1699
        %v1704 = vsel %vm651, -1e+09, %v1700
        %v1705 = vsel %vm651, -1e+09, %v1701
        %v1706 = vsel %vm339, %v1702, -inf
        %1707 = vmax.xlane.f32.xlu0 %v1706
        %v1708 = vpop.xlane.xlu0 %1707
        %v1709 = vsel %vm339, %v1703, -inf
        %1710 = vmax.xlane.f32.xlu0 %v1709
        %v1711 = vpop.xlane.xlu0 %1710
        %v1712 = vsel %vm339, %v1704, -inf
        %1713 = vmax.xlane.f32.xlu0 %v1712
        %v1714 = vpop.xlane.xlu0 %1713
        %v1715 = vsel %vm339, %v1705, -inf
        %1716 = vmax.xlane.f32.xlu0 %v1715
        %v1717 = vpop.xlane.xlu0 %1716
        %v1718 = vsub.f32 %v1702, %v1708
        %v1719 = vsub.f32 %v1703, %v1711
        %v1720 = vsub.f32 %v1704, %v1714
        %v1721 = vsub.f32 %v1705, %v1717
        %v1722 = vmul.f32 %v1718, 1.442695
        %v1723 = vpow.pop %v1722
        %v1724 = vmul.f32 %v1719, 1.442695
        %v1725 = vpow.pop %v1724
        %v1726 = vmul.f32 %v1720, 1.442695
        %v1727 = vpow.pop %v1726
        %v1728 = vmul.f32 %v1721, 1.442695
        %v1729 = vpow.pop %v1728
        %v1730 = vsel %vm339, %v1723, 0.0
        %1731 = vadd.xlane.f32.xlu0 %v1730
        %v1732 = vpop.xlane.xlu0 %1731
        %v1733 = vsel %vm339, %v1725, 0.0
        %1734 = vadd.xlane.f32.xlu0 %v1733
        %v1735 = vpop.xlane.xlu0 %1734
        %v1736 = vsel %vm339, %v1727, 0.0
        %1737 = vadd.xlane.f32.xlu0 %v1736
        %v1738 = vpop.xlane.xlu0 %1737
        %v1739 = vsel %vm339, %v1729, 0.0
        %1740 = vadd.xlane.f32.xlu0 %v1739
        %v1741 = vpop.xlane.xlu0 %1740
        %v1742 = vrcp.pop %v1732
        %v1743 = vrcp.pop %v1735
        %v1744 = vrcp.pop %v1738
        %v1745 = vrcp.pop %v1741
        %v1746 = vmul.f32 %v1723, %v1742
        %v1747 = vmul.f32 %v1725, %v1743
        %v1748 = vmul.f32 %v1727, %v1744
        %v1749 = vmul.f32 %v1729, %v1745
        %1750 = vrot.lane.b32.xlu0 %v1384, 64
        %v1751 = vpop.permute.xlu0 %1750
        %v1754 = vsel %vm339, %v1746, 0
        %1756 = vmatprep.subr.mxu0 0.0
        %1757 = vmatpush1.msra.mxu0 0.0
        %1758 = vmatprep.subr.mxu0 0.0
        %1759 = vmatpush1.msra.mxu0 0.0
        %1760 = vmatprep.subr.mxu0 0.0
        %1761 = vmatpush1.msra.mxu0 0.0
        %1762 = vmatprep.subr.mxu0 0.0
        %1763 = vmatpush1.msra.mxu0 0.0
        %1764 = vmatprep.subr.mxu0 0.0
        %1765 = vmatpush1.msra.mxu0 0.0
        %1766 = vmatprep.subr.mxu0 0.0
        %1767 = vmatpush1.msra.mxu0 0.0
        %1768 = vmatprep.subr.mxu0 0.0
        %1769 = vmatpush1.msra.mxu0 0.0
        %1770 = vmatprep.subr.mxu0 0.0
        %1771 = vmatpush1.msra.mxu0 0.0
        %1772 = vmatprep.subr.mxu0 0.0
        %1773 = vmatpush1.msra.mxu0 0.0
        %1774 = vmatprep.subr.mxu0 0.0
        %1775 = vmatpush1.msra.mxu0 0.0
        %1776 = vmatprep.subr.mxu0 0.0
        %1777 = vmatpush1.msra.mxu0 0.0
        %1778 = vmatprep.subr.mxu0 0.0
        %1779 = vmatpush1.msra.mxu0 0.0
        %1780 = vmatprep.subr.mxu0 0.0
        %1781 = vmatpush1.msra.mxu0 0.0
        %1782 = vmatprep.subr.mxu0 0.0
        %1783 = vmatpush1.msra.mxu0 0.0
        %1784 = vmatprep.subr.mxu0 0.0
        %1785 = vmatpush1.msra.mxu0 0.0
        %1786 = vmatprep.subr.mxu0 0.0
        %1787 = vmatpush1.msra.mxu0 %v1751
        %1788 = vmatprep.subr.mxu0 0.0
        %1789 = vmatpush2.msra.mxu0 0.0
        %1790 = vmatprep.subr.mxu0 0.0
        %1791 = vmatpush2.msra.mxu0 0.0
        %1792 = vmatprep.subr.mxu0 0.0
        %1793 = vmatpush2.msra.mxu0 0.0
        %1794 = vmatprep.subr.mxu0 0.0
        %1795 = vmatpush2.msra.mxu0 0.0
        %1796 = vmatprep.subr.mxu0 0.0
        %1797 = vmatpush2.msra.mxu0 0.0
        %1798 = vmatprep.subr.mxu0 0.0
        %1799 = vmatpush2.msra.mxu0 0.0
        %1800 = vmatprep.subr.mxu0 0.0
        %1801 = vmatpush2.msra.mxu0 0.0
        %1802 = vmatprep.subr.mxu0 0.0
        %1803 = vmatpush2.msra.mxu0 0.0
        %1804 = vmatprep.subr.mxu0 0.0
        %1805 = vmatpush2.msra.mxu0 0.0
        %1806 = vmatprep.subr.mxu0 0.0
        %1807 = vmatpush2.msra.mxu0 0.0
        %1808 = vmatprep.subr.mxu0 0.0
        %1809 = vmatpush2.msra.mxu0 0.0
        %1810 = vmatprep.subr.mxu0 0.0
        %1811 = vmatpush2.msra.mxu0 0.0
        %1812 = vmatprep.subr.mxu0 0.0
        %1813 = vmatpush2.msra.mxu0 0.0
        %1814 = vmatprep.subr.mxu0 0.0
        %1815 = vmatpush2.msra.mxu0 0.0
        %1816 = vmatprep.subr.mxu0 0.0
        %1817 = vmatpush2.msra.mxu0 0.0
        %1818 = vmatprep.subr.mxu0 0.0
        %1819 = vmatpush2.msra.mxu0 0.0
        %1820 = vmatprep.mubr.f32.mxu0 0.0
        %1821 = vmatmul.mubr.f32.gmra.mxu0 %v1754
        %v1822 = vpop.f32.mrf.mxu0
        %v1823 = vadd.f32 0.0, %v1822
        %v1824 = vpop.f32.mrf.mxu0
        %1825 = vdwg.mxu0
        %1826 = vrot.lane.b32.xlu0 %v1389, 64
        %v1827 = vpop.permute.xlu0 %1826
        %v1830 = vsel %vm339, %v1747, 0
        %1832 = vmatprep.subr.mxu0 0.0
        %1833 = vmatpush1.msra.mxu0 0.0
        %1834 = vmatprep.subr.mxu0 0.0
        %1835 = vmatpush1.msra.mxu0 0.0
        %1836 = vmatprep.subr.mxu0 0.0
        %1837 = vmatpush1.msra.mxu0 0.0
        %1838 = vmatprep.subr.mxu0 0.0
        %1839 = vmatpush1.msra.mxu0 0.0
        %1840 = vmatprep.subr.mxu0 0.0
        %1841 = vmatpush1.msra.mxu0 0.0
        %1842 = vmatprep.subr.mxu0 0.0
        %1843 = vmatpush1.msra.mxu0 0.0
        %1844 = vmatprep.subr.mxu0 0.0
        %1845 = vmatpush1.msra.mxu0 0.0
        %1846 = vmatprep.subr.mxu0 0.0
        %1847 = vmatpush1.msra.mxu0 0.0
        %1848 = vmatprep.subr.mxu0 0.0
        %1849 = vmatpush1.msra.mxu0 0.0
        %1850 = vmatprep.subr.mxu0 0.0
        %1851 = vmatpush1.msra.mxu0 0.0
        %1852 = vmatprep.subr.mxu0 0.0
        %1853 = vmatpush1.msra.mxu0 0.0
        %1854 = vmatprep.subr.mxu0 0.0
        %1855 = vmatpush1.msra.mxu0 0.0
        %1856 = vmatprep.subr.mxu0 0.0
        %1857 = vmatpush1.msra.mxu0 0.0
        %1858 = vmatprep.subr.mxu0 0.0
        %1859 = vmatpush1.msra.mxu0 0.0
        %1860 = vmatprep.subr.mxu0 0.0
        %1861 = vmatpush1.msra.mxu0 0.0
        %1862 = vmatprep.subr.mxu0 0.0
        %1863 = vmatpush1.msra.mxu0 %v1827
        %1864 = vmatprep.subr.mxu0 0.0
        %1865 = vmatpush2.msra.mxu0 0.0
        %1866 = vmatprep.subr.mxu0 0.0
        %1867 = vmatpush2.msra.mxu0 0.0
        %1868 = vmatprep.subr.mxu0 0.0
        %1869 = vmatpush2.msra.mxu0 0.0
        %1870 = vmatprep.subr.mxu0 0.0
        %1871 = vmatpush2.msra.mxu0 0.0
        %1872 = vmatprep.subr.mxu0 0.0
        %1873 = vmatpush2.msra.mxu0 0.0
        %1874 = vmatprep.subr.mxu0 0.0
        %1875 = vmatpush2.msra.mxu0 0.0
        %1876 = vmatprep.subr.mxu0 0.0
        %1877 = vmatpush2.msra.mxu0 0.0
        %1878 = vmatprep.subr.mxu0 0.0
        %1879 = vmatpush2.msra.mxu0 0.0
        %1880 = vmatprep.subr.mxu0 0.0
        %1881 = vmatpush2.msra.mxu0 0.0
        %1882 = vmatprep.subr.mxu0 0.0
        %1883 = vmatpush2.msra.mxu0 0.0
        %1884 = vmatprep.subr.mxu0 0.0
        %1885 = vmatpush2.msra.mxu0 0.0
        %1886 = vmatprep.subr.mxu0 0.0
        %1887 = vmatpush2.msra.mxu0 0.0
        %1888 = vmatprep.subr.mxu0 0.0
        %1889 = vmatpush2.msra.mxu0 0.0
        %1890 = vmatprep.subr.mxu0 0.0
        %1891 = vmatpush2.msra.mxu0 0.0
        %1892 = vmatprep.subr.mxu0 0.0
        %1893 = vmatpush2.msra.mxu0 0.0
        %1894 = vmatprep.subr.mxu0 0.0
        %1895 = vmatpush2.msra.mxu0 0.0
        %1896 = vmatprep.mubr.f32.mxu0 0.0
        %1897 = vmatmul.mubr.f32.gmra.mxu0 %v1830
        %v1898 = vpop.f32.mrf.mxu0
        %v1899 = vadd.f32 0.0, %v1898
        %v1900 = vpop.f32.mrf.mxu0
        %1901 = vdwg.mxu0
        %1902 = vrot.lane.b32.xlu0 %v1391, 64
        %v1903 = vpop.permute.xlu0 %1902
        %v1906 = vsel %vm339, %v1748, 0
        %1908 = vmatprep.subr.mxu0 0.0
        %1909 = vmatpush1.msra.mxu0 0.0
        %1910 = vmatprep.subr.mxu0 0.0
        %1911 = vmatpush1.msra.mxu0 0.0
        %1912 = vmatprep.subr.mxu0 0.0
        %1913 = vmatpush1.msra.mxu0 0.0
        %1914 = vmatprep.subr.mxu0 0.0
        %1915 = vmatpush1.msra.mxu0 0.0
        %1916 = vmatprep.subr.mxu0 0.0
        %1917 = vmatpush1.msra.mxu0 0.0
        %1918 = vmatprep.subr.mxu0 0.0
        %1919 = vmatpush1.msra.mxu0 0.0
        %1920 = vmatprep.subr.mxu0 0.0
        %1921 = vmatpush1.msra.mxu0 0.0
        %1922 = vmatprep.subr.mxu0 0.0
        %1923 = vmatpush1.msra.mxu0 0.0
        %1924 = vmatprep.subr.mxu0 0.0
        %1925 = vmatpush1.msra.mxu0 0.0
        %1926 = vmatprep.subr.mxu0 0.0
        %1927 = vmatpush1.msra.mxu0 0.0
        %1928 = vmatprep.subr.mxu0 0.0
        %1929 = vmatpush1.msra.mxu0 0.0
        %1930 = vmatprep.subr.mxu0 0.0
        %1931 = vmatpush1.msra.mxu0 0.0
        %1932 = vmatprep.subr.mxu0 0.0
        %1933 = vmatpush1.msra.mxu0 0.0
        %1934 = vmatprep.subr.mxu0 0.0
        %1935 = vmatpush1.msra.mxu0 0.0
        %1936 = vmatprep.subr.mxu0 0.0
        %1937 = vmatpush1.msra.mxu0 0.0
        %1938 = vmatprep.subr.mxu0 0.0
        %1939 = vmatpush1.msra.mxu0 %v1903
        %1940 = vmatprep.subr.mxu0 0.0
        %1941 = vmatpush2.msra.mxu0 0.0
        %1942 = vmatprep.subr.mxu0 0.0
        %1943 = vmatpush2.msra.mxu0 0.0
        %1944 = vmatprep.subr.mxu0 0.0
        %1945 = vmatpush2.msra.mxu0 0.0
        %1946 = vmatprep.subr.mxu0 0.0
        %1947 = vmatpush2.msra.mxu0 0.0
        %1948 = vmatprep.subr.mxu0 0.0
        %1949 = vmatpush2.msra.mxu0 0.0
        %1950 = vmatprep.subr.mxu0 0.0
        %1951 = vmatpush2.msra.mxu0 0.0
        %1952 = vmatprep.subr.mxu0 0.0
        %1953 = vmatpush2.msra.mxu0 0.0
        %1954 = vmatprep.subr.mxu0 0.0
        %1955 = vmatpush2.msra.mxu0 0.0
        %1956 = vmatprep.subr.mxu0 0.0
        %1957 = vmatpush2.msra.mxu0 0.0
        %1958 = vmatprep.subr.mxu0 0.0
        %1959 = vmatpush2.msra.mxu0 0.0
        %1960 = vmatprep.subr.mxu0 0.0
        %1961 = vmatpush2.msra.mxu0 0.0
        %1962 = vmatprep.subr.mxu0 0.0
        %1963 = vmatpush2.msra.mxu0 0.0
        %1964 = vmatprep.subr.mxu0 0.0
        %1965 = vmatpush2.msra.mxu0 0.0
        %1966 = vmatprep.subr.mxu0 0.0
        %1967 = vmatpush2.msra.mxu0 0.0
        %1968 = vmatprep.subr.mxu0 0.0
        %1969 = vmatpush2.msra.mxu0 0.0
        %1970 = vmatprep.subr.mxu0 0.0
        %1971 = vmatpush2.msra.mxu0 0.0
        %1972 = vmatprep.mubr.f32.mxu0 0.0
        %1973 = vmatmul.mubr.f32.gmra.mxu0 %v1906
        %v1974 = vpop.f32.mrf.mxu0
        %v1975 = vadd.f32 0.0, %v1974
        %v1976 = vpop.f32.mrf.mxu0
        %1977 = vdwg.mxu0
        %1978 = vrot.lane.b32.xlu0 %v1393, 64
        %v1979 = vpop.permute.xlu0 %1978
        %v1982 = vsel %vm339, %v1749, 0
        %1984 = vmatprep.subr.mxu0 0.0
        %1985 = vmatpush1.msra.mxu0 0.0
        %1986 = vmatprep.subr.mxu0 0.0
        %1987 = vmatpush1.msra.mxu0 0.0
        %1988 = vmatprep.subr.mxu0 0.0
        %1989 = vmatpush1.msra.mxu0 0.0
        %1990 = vmatprep.subr.mxu0 0.0
        %1991 = vmatpush1.msra.mxu0 0.0
        %1992 = vmatprep.subr.mxu0 0.0
        %1993 = vmatpush1.msra.mxu0 0.0
        %1994 = vmatprep.subr.mxu0 0.0
        %1995 = vmatpush1.msra.mxu0 0.0
        %1996 = vmatprep.subr.mxu0 0.0
        %1997 = vmatpush1.msra.mxu0 0.0
        %1998 = vmatprep.subr.mxu0 0.0
        %1999 = vmatpush1.msra.mxu0 0.0
        %2000 = vmatprep.subr.mxu0 0.0
        %2001 = vmatpush1.msra.mxu0 0.0
        %2002 = vmatprep.subr.mxu0 0.0
        %2003 = vmatpush1.msra.mxu0 0.0
        %2004 = vmatprep.subr.mxu0 0.0
        %2005 = vmatpush1.msra.mxu0 0.0
        %2006 = vmatprep.subr.mxu0 0.0
        %2007 = vmatpush1.msra.mxu0 0.0
        %2008 = vmatprep.subr.mxu0 0.0
        %2009 = vmatpush1.msra.mxu0 0.0
        %2010 = vmatprep.subr.mxu0 0.0
        %2011 = vmatpush1.msra.mxu0 0.0
        %2012 = vmatprep.subr.mxu0 0.0
        %2013 = vmatpush1.msra.mxu0 0.0
        %2014 = vmatprep.subr.mxu0 0.0
        %2015 = vmatpush1.msra.mxu0 %v1979
        %2016 = vmatprep.subr.mxu0 0.0
        %2017 = vmatpush2.msra.mxu0 0.0
        %2018 = vmatprep.subr.mxu0 0.0
        %2019 = vmatpush2.msra.mxu0 0.0
        %2020 = vmatprep.subr.mxu0 0.0
        %2021 = vmatpush2.msra.mxu0 0.0
        %2022 = vmatprep.subr.mxu0 0.0
        %2023 = vmatpush2.msra.mxu0 0.0
        %2024 = vmatprep.subr.mxu0 0.0
        %2025 = vmatpush2.msra.mxu0 0.0
        %2026 = vmatprep.subr.mxu0 0.0
        %2027 = vmatpush2.msra.mxu0 0.0
        %2028 = vmatprep.subr.mxu0 0.0
        %2029 = vmatpush2.msra.mxu0 0.0
        %2030 = vmatprep.subr.mxu0 0.0
        %2031 = vmatpush2.msra.mxu0 0.0
        %2032 = vmatprep.subr.mxu0 0.0
        %2033 = vmatpush2.msra.mxu0 0.0
        %2034 = vmatprep.subr.mxu0 0.0
        %2035 = vmatpush2.msra.mxu0 0.0
        %2036 = vmatprep.subr.mxu0 0.0
        %2037 = vmatpush2.msra.mxu0 0.0
        %2038 = vmatprep.subr.mxu0 0.0
        %2039 = vmatpush2.msra.mxu0 0.0
        %2040 = vmatprep.subr.mxu0 0.0
        %2041 = vmatpush2.msra.mxu0 0.0
        %2042 = vmatprep.subr.mxu0 0.0
        %2043 = vmatpush2.msra.mxu0 0.0
        %2044 = vmatprep.subr.mxu0 0.0
        %2045 = vmatpush2.msra.mxu0 0.0
        %2046 = vmatprep.subr.mxu0 0.0
        %2047 = vmatpush2.msra.mxu0 0.0
        %2048 = vmatprep.mubr.f32.mxu0 0.0
        %2049 = vmatmul.mubr.f32.gmra.mxu0 %v1982
        %v2050 = vpop.f32.mrf.mxu0
        %v2051 = vadd.f32 0.0, %v2050
        %v2052 = vpop.f32.mrf.mxu0
        %2053 = vdwg.mxu0
        %2055 = vrot.lane.b32.xlu0 %v1899, 8
        %v2056 = vpop.permute.xlu0 %2055
        %2059 = vrot.lane.b32.xlu0 %v1975, 16
        %v2060 = vpop.permute.xlu0 %2059
        %2063 = vrot.lane.b32.xlu0 %v2051, 24
        %v2064 = vpop.permute.xlu0 %2063
        %v2066 = vsel %vm339, %v1823, %v2056
        %v2067 = vsel %vm1017, %v2066, %v2060
        %v2068 = vsel %vm1019, %v2067, %v2064
        %v2069 = vlaneseq
        %v2070 = vshrl.u32 %v2069, 7
        %v2071 = vsub.s32 1, %v2070
        %v2072 = vrot.slane %v1309, %v2071
        %v2074 = vsel %vm256, %v2068, 0
        %2076 = vmatprep.subr.mxu0 0.0
        %2077 = vmatpush1.msra.mxu0 0.0
        %2078 = vmatprep.subr.mxu0 0.0
        %2079 = vmatpush1.msra.mxu0 0.0
        %2080 = vmatprep.subr.mxu0 0.0
        %2081 = vmatpush1.msra.mxu0 0.0
        %2082 = vmatprep.subr.mxu0 0.0
        %2083 = vmatpush1.msra.mxu0 0.0
        %2084 = vmatprep.subr.mxu0 0.0
        %2085 = vmatpush1.msra.mxu0 0.0
        %2086 = vmatprep.subr.mxu0 0.0
        %2087 = vmatpush1.msra.mxu0 0.0
        %2088 = vmatprep.subr.mxu0 0.0
        %2089 = vmatpush1.msra.mxu0 0.0
        %2090 = vmatprep.subr.mxu0 0.0
        %2091 = vmatpush1.msra.mxu0 0.0
        %2092 = vmatprep.subr.mxu0 0.0
        %2093 = vmatpush1.msra.mxu0 0.0
        %2094 = vmatprep.subr.mxu0 0.0
        %2095 = vmatpush1.msra.mxu0 0.0
        %2096 = vmatprep.subr.mxu0 0.0
        %2097 = vmatpush1.msra.mxu0 0.0
        %2098 = vmatprep.subr.mxu0 0.0
        %2099 = vmatpush1.msra.mxu0 0.0
        %2100 = vmatprep.subr.mxu0 0.0
        %2101 = vmatpush1.msra.mxu0 %v1288
        %2102 = vmatprep.subr.mxu0 0.0
        %2103 = vmatpush1.msra.mxu0 %v1287
        %2104 = vmatprep.subr.mxu0 0.0
        %2105 = vmatpush1.msra.mxu0 %v1286
        %2106 = vmatprep.subr.mxu0 0.0
        %2107 = vmatpush1.msra.mxu0 %v1285
        %2108 = vmatprep.subr.mxu0 0.0
        %2109 = vmatpush2.msra.mxu0 0.0
        %2110 = vmatprep.subr.mxu0 0.0
        %2111 = vmatpush2.msra.mxu0 0.0
        %2112 = vmatprep.subr.mxu0 0.0
        %2113 = vmatpush2.msra.mxu0 0.0
        %2114 = vmatprep.subr.mxu0 0.0
        %2115 = vmatpush2.msra.mxu0 0.0
        %2116 = vmatprep.subr.mxu0 0.0
        %2117 = vmatpush2.msra.mxu0 0.0
        %2118 = vmatprep.subr.mxu0 0.0
        %2119 = vmatpush2.msra.mxu0 0.0
        %2120 = vmatprep.subr.mxu0 0.0
        %2121 = vmatpush2.msra.mxu0 0.0
        %2122 = vmatprep.subr.mxu0 0.0
        %2123 = vmatpush2.msra.mxu0 0.0
        %2124 = vmatprep.subr.mxu0 0.0
        %2125 = vmatpush2.msra.mxu0 0.0
        %2126 = vmatprep.subr.mxu0 0.0
        %2127 = vmatpush2.msra.mxu0 0.0
        %2128 = vmatprep.subr.mxu0 0.0
        %2129 = vmatpush2.msra.mxu0 0.0
        %2130 = vmatprep.subr.mxu0 0.0
        %2131 = vmatpush2.msra.mxu0 0.0
        %2132 = vmatprep.subr.mxu0 0.0
        %2133 = vmatpush2.msra.mxu0 0.0
        %2134 = vmatprep.subr.mxu0 0.0
        %2135 = vmatpush2.msra.mxu0 0.0
        %2136 = vmatprep.subr.mxu0 0.0
        %2137 = vmatpush2.msra.mxu0 0.0
        %2138 = vmatprep.subr.mxu0 0.0
        %2139 = vmatpush2.msra.mxu0 0.0
        %2140 = vmatprep.mubr.f32.mxu0 0.0
        %2141 = vmatmul.mubr.f32.gmra.mxu0 %v2074
        %v2142 = vpop.f32.mrf.mxu0
        %v2143 = vadd.f32 %v2072, %v2142
        %v2144 = vpop.f32.mrf.mxu0
        %2145 = vdwg.mxu0
        %v2146 = vadd.f32 %v2143, %v1279
        %v2147 = vsel %vm256, %v2146, 0.0
        %2148 = vadd.xlane.f32.xlu0 %v2147
        %v2149 = vpop.xlane.xlu0 %2148
        %v2150 = vmul.f32 %v2149, %v1102
        %v2151 = vsub.f32 %v2146, %v2150
        %v2152 = vmul.f32 %v2151, %v2151
        %v2153 = vsel %vm256, %v2152, 0.0
        %2154 = vadd.xlane.f32.xlu0 %v2153
        %v2155 = vpop.xlane.xlu0 %2154
        %v2156 = vmul.f32 %v2155, %v1102
        %v2157 = vadd.f32 %v2156, 1e-05
        %v2158 = vrsqrt.pop %v2157
        %v2159 = vmul.f32 %v2151, %v2158
        %v2160 = vlaneseq
        %v2161 = vshrl.u32 %v2160, 7
        %v2162 = vsub.s32 2, %v2161
        %v2163 = vrot.slane %v1309, %v2162
        %v2165 = vsel %vm256, %v2159, 0
        %2167 = vmatprep.subr.mxu0 0.0
        %2168 = vmatpush1.msra.mxu0 0.0
        %2169 = vmatprep.subr.mxu0 0.0
        %2170 = vmatpush1.msra.mxu0 0.0
        %2171 = vmatprep.subr.mxu0 0.0
        %2172 = vmatpush1.msra.mxu0 0.0
        %2173 = vmatprep.subr.mxu0 0.0
        %2174 = vmatpush1.msra.mxu0 0.0
        %2175 = vmatprep.subr.mxu0 0.0
        %2176 = vmatpush1.msra.mxu0 0.0
        %2177 = vmatprep.subr.mxu0 0.0
        %2178 = vmatpush1.msra.mxu0 0.0
        %2179 = vmatprep.subr.mxu0 0.0
        %2180 = vmatpush1.msra.mxu0 0.0
        %2181 = vmatprep.subr.mxu0 0.0
        %2182 = vmatpush1.msra.mxu0 0.0
        %2183 = vmatprep.subr.mxu0 0.0
        %2184 = vmatpush1.msra.mxu0 0.0
        %2185 = vmatprep.subr.mxu0 0.0
        %2186 = vmatpush1.msra.mxu0 0.0
        %2187 = vmatprep.subr.mxu0 0.0
        %2188 = vmatpush1.msra.mxu0 0.0
        %2189 = vmatprep.subr.mxu0 0.0
        %2190 = vmatpush1.msra.mxu0 0.0
        %2191 = vmatprep.subr.mxu0 0.0
        %2192 = vmatpush1.msra.mxu0 %v1292
        %2193 = vmatprep.subr.mxu0 0.0
        %2194 = vmatpush1.msra.mxu0 %v1291
        %2195 = vmatprep.subr.mxu0 0.0
        %2196 = vmatpush1.msra.mxu0 %v1290
        %2197 = vmatprep.subr.mxu0 0.0
        %2198 = vmatpush1.msra.mxu0 %v1289
        %2199 = vmatprep.subr.mxu0 0.0
        %2200 = vmatpush2.msra.mxu0 0.0
        %2201 = vmatprep.subr.mxu0 0.0
        %2202 = vmatpush2.msra.mxu0 0.0
        %2203 = vmatprep.subr.mxu0 0.0
        %2204 = vmatpush2.msra.mxu0 0.0
        %2205 = vmatprep.subr.mxu0 0.0
        %2206 = vmatpush2.msra.mxu0 0.0
        %2207 = vmatprep.subr.mxu0 0.0
        %2208 = vmatpush2.msra.mxu0 0.0
        %2209 = vmatprep.subr.mxu0 0.0
        %2210 = vmatpush2.msra.mxu0 0.0
        %2211 = vmatprep.subr.mxu0 0.0
        %2212 = vmatpush2.msra.mxu0 0.0
        %2213 = vmatprep.subr.mxu0 0.0
        %2214 = vmatpush2.msra.mxu0 0.0
        %2215 = vmatprep.subr.mxu0 0.0
        %2216 = vmatpush2.msra.mxu0 0.0
        %2217 = vmatprep.subr.mxu0 0.0
        %2218 = vmatpush2.msra.mxu0 0.0
        %2219 = vmatprep.subr.mxu0 0.0
        %2220 = vmatpush2.msra.mxu0 0.0
        %2221 = vmatprep.subr.mxu0 0.0
        %2222 = vmatpush2.msra.mxu0 0.0
        %2223 = vmatprep.subr.mxu0 0.0
        %2224 = vmatpush2.msra.mxu0 0.0
        %2225 = vmatprep.subr.mxu0 0.0
        %2226 = vmatpush2.msra.mxu0 0.0
        %2227 = vmatprep.subr.mxu0 0.0
        %2228 = vmatpush2.msra.mxu0 0.0
        %2229 = vmatprep.subr.mxu0 0.0
        %2230 = vmatpush2.msra.mxu0 0.0
        %2231 = vmatprep.mubr.f32.mxu0 0.0
        %2232 = vmatmul.mubr.f32.gmra.mxu0 %v2165
        %v2233 = vpop.f32.mrf.mxu0
        %v2234 = vadd.f32 %v2163, %v2233
        %v2235 = vpop.f32.mrf.mxu0
        %2236 = vdwg.mxu0
        %v2237 = vmax.f32 %v2234, 0.0
        %v2238 = vlaneseq
        %v2239 = vshrl.u32 %v2238, 7
        %v2240 = vsub.s32 3, %v2239
        %v2241 = vrot.slane %v1309, %v2240
        %2242 = vmatprep.subr.mxu0 0.0
        %2243 = vmatpush1.msra.mxu0 %v1308
        %2244 = vmatprep.subr.mxu0 0.0
        %2245 = vmatpush1.msra.mxu0 %v1307
        %2246 = vmatprep.subr.mxu0 0.0
        %2247 = vmatpush1.msra.mxu0 %v1306
        %2248 = vmatprep.subr.mxu0 0.0
        %2249 = vmatpush1.msra.mxu0 %v1305
        %2250 = vmatprep.subr.mxu0 0.0
        %2251 = vmatpush1.msra.mxu0 %v1304
        %2252 = vmatprep.subr.mxu0 0.0
        %2253 = vmatpush1.msra.mxu0 %v1303
        %2254 = vmatprep.subr.mxu0 0.0
        %2255 = vmatpush1.msra.mxu0 %v1302
        %2256 = vmatprep.subr.mxu0 0.0
        %2257 = vmatpush1.msra.mxu0 %v1301
        %2258 = vmatprep.subr.mxu0 0.0
        %2259 = vmatpush1.msra.mxu0 %v1300
        %2260 = vmatprep.subr.mxu0 0.0
        %2261 = vmatpush1.msra.mxu0 %v1299
        %2262 = vmatprep.subr.mxu0 0.0
        %2263 = vmatpush1.msra.mxu0 %v1298
        %2264 = vmatprep.subr.mxu0 0.0
        %2265 = vmatpush1.msra.mxu0 %v1297
        %2266 = vmatprep.subr.mxu0 0.0
        %2267 = vmatpush1.msra.mxu0 %v1296
        %2268 = vmatprep.subr.mxu0 0.0
        %2269 = vmatpush1.msra.mxu0 %v1295
        %2270 = vmatprep.subr.mxu0 0.0
        %2271 = vmatpush1.msra.mxu0 %v1294
        %2272 = vmatprep.subr.mxu0 0.0
        %2273 = vmatpush1.msra.mxu0 %v1293
        %2274 = vmatprep.subr.mxu0 0.0
        %2275 = vmatpush2.msra.mxu0 0.0
        %2276 = vmatprep.subr.mxu0 0.0
        %2277 = vmatpush2.msra.mxu0 0.0
        %2278 = vmatprep.subr.mxu0 0.0
        %2279 = vmatpush2.msra.mxu0 0.0
        %2280 = vmatprep.subr.mxu0 0.0
        %2281 = vmatpush2.msra.mxu0 0.0
        %2282 = vmatprep.subr.mxu0 0.0
        %2283 = vmatpush2.msra.mxu0 0.0
        %2284 = vmatprep.subr.mxu0 0.0
        %2285 = vmatpush2.msra.mxu0 0.0
        %2286 = vmatprep.subr.mxu0 0.0
        %2287 = vmatpush2.msra.mxu0 0.0
        %2288 = vmatprep.subr.mxu0 0.0
        %2289 = vmatpush2.msra.mxu0 0.0
        %2290 = vmatprep.subr.mxu0 0.0
        %2291 = vmatpush2.msra.mxu0 0.0
        %2292 = vmatprep.subr.mxu0 0.0
        %2293 = vmatpush2.msra.mxu0 0.0
        %2294 = vmatprep.subr.mxu0 0.0
        %2295 = vmatpush2.msra.mxu0 0.0
        %2296 = vmatprep.subr.mxu0 0.0
        %2297 = vmatpush2.msra.mxu0 0.0
        %2298 = vmatprep.subr.mxu0 0.0
        %2299 = vmatpush2.msra.mxu0 0.0
        %2300 = vmatprep.subr.mxu0 0.0
        %2301 = vmatpush2.msra.mxu0 0.0
        %2302 = vmatprep.subr.mxu0 0.0
        %2303 = vmatpush2.msra.mxu0 0.0
        %2304 = vmatprep.subr.mxu0 0.0
        %2305 = vmatpush2.msra.mxu0 0.0
        %2306 = vmatprep.mubr.f32.mxu0 0.0
        %2307 = vmatmul.mubr.f32.gmra.mxu0 %v2237
        %v2308 = vpop.f32.mrf.mxu0
        %v2309 = vadd.f32 %v2241, %v2308
        %v2310 = vpop.f32.mrf.mxu0
        %2311 = vdwg.mxu0
        %s2312 = scalar_lea.vmem %s219, 8
        %2313 = vst.msk [vmem:[%s2312] sm:$0xff] %vm256, %v2068
        %v2314 = vadd.f32 %v1279, %v2309
        %v2315 = vsel %vm256, %v2314, 0.0
        %2316 = vadd.xlane.f32.xlu0 %v2315
        %v2317 = vpop.xlane.xlu0 %2316
        %v2318 = vmul.f32 %v2317, %v1102
        %v2319 = vsub.f32 %v2314, %v2318
        %v2320 = vmul.f32 %v2319, %v2319
        %v2321 = vsel %vm256, %v2320, 0.0
        %2322 = vadd.xlane.f32.xlu0 %v2321
        %v2323 = vpop.xlane.xlu0 %2322
        %v2324 = vmul.f32 %v2323, %v1102
        %v2325 = vadd.f32 %v2324, 1e-05
        %v2326 = vrsqrt.pop %v2325
        %v2327 = vmul.f32 %v2319, %v2326
        %2328 = vst.msk [vmem:[%s200] sm:$0xff] %vm256, %v2327
        %s2329 = sand.u32 %s100, 1
        %s2330 = scalar_lea.sflag [#allocation3], %s2329
        %s2331 = sand.u32 %s100, 1
        %s2332 = smul.addr %s2331, 8
        %s2333 = scalar_lea.vmem [#allocation2], %s2332
        %p2334 = scmp.lt.s32.totalorder %s19, 1
        %s2335 = scalar_select %p2334, %s19, 1
        %s2336 = smul.addr %s2335, 2
        %s2337 = smul.addr %s2336, 8
        %s2338 = scalar_lea.vmem %s4, %s2337
        // Predicated region
        $region33: #{encoder_forward.1} parent=31 // pred_check
          %p2339 = pneg %p110
        $region34: #{encoder_forward.1} parent=31 // pred_check_branch
          %2341 = sbr.rel (%p2339) target = $region36
        $region35: #{encoder_forward.1} parent=31 // pred_region
          %s2343 = ssub.s32 128, 128
          %2344 = vsyncadd %s2330, %s2343
          %s2345 = smul.addr %s19, 128
          %s2346 = scalar_lea.hbm %s3, %s2345
          %s2348 = sshll.u32 %s2333, 4
          %s2349 = int_to_ptr.vmem [resolvable:$true] %s2348
          %2351 = dma.vmem_to_hbm [thread:$0]  %s2349, 128, %s2346, %s2330
        $region36: #{encoder_forward.1} parent=31 // pred_fallthru
          _
        // Predicated region
        $region37: #{encoder_forward.1} parent=31 // pred_check
          %p2352 = pneg %p136
        $region38: #{encoder_forward.1} parent=31 // pred_check_branch
          %2354 = sbr.rel (%p2352) target = $region40
        $region39: #{encoder_forward.1} parent=31 // pred_region
          _
        $region40: #{encoder_forward.1} parent=31 // pred_fallthru
          _
      $region32: #{encoder_forward.1} parent=5 // pred_fallthru
        _
      %p2355 = scmp.le.s32.totalorder 2, %s14
      // Predicated region
      $region41: #{encoder_forward.1} parent=5 // pred_check
        %p2356 = pneg %p2355
      $region42: #{encoder_forward.1} parent=5 // pred_check_branch
        %2358 = sbr.rel (%p2356) target = $region44
      $region43: #{encoder_forward.1} parent=5 // pred_region
        %s2359 = ssub.s32 %s14, 2
        // Predicated region
        $region45: #{encoder_forward.1} parent=43 // pred_check
          %p2360 = pneg %p116
        $region46: #{encoder_forward.1} parent=43 // pred_check_branch
          %2362 = sbr.rel (%p2360) target = $region48
        $region47: #{encoder_forward.1} parent=43 // pred_region
          %s2363 = sand.u32 %s101, 1
          %s2364 = scalar_lea.sflag [#allocation3], %s2363
          %s2365 = sand.u32 %s101, 1
          %s2366 = smul.addr %s2365, 8
          %s2367 = scalar_lea.vmem [#allocation2], %s2366
          %2368 = dma.done %s2364, 128
        $region48: #{encoder_forward.1} parent=43 // pred_fallthru
          _
        // Predicated region
        $region49: #{encoder_forward.1} parent=43 // pred_check
          %p2369 = pneg %p142
        $region50: #{encoder_forward.1} parent=43 // pred_check_branch
          %2371 = sbr.rel (%p2369) target = $region52
        $region51: #{encoder_forward.1} parent=43 // pred_region
          %p2372 = scmp.lt.s32.totalorder %s20, 1
          %s2373 = scalar_select %p2372, %s20, 1
          %s2374 = smul.addr %s2373, 2
          %s2375 = smul.addr %s2374, 8
          %s2376 = scalar_lea.vmem %s4, %s2375
        $region52: #{encoder_forward.1} parent=43 // pred_fallthru
          _
      $region44: #{encoder_forward.1} parent=5 // pred_fallthru
        _
    $region6: #{encoder_forward.1} parent=1 // loop_footer
      %s18 = sadd.s32 1, %s14
    $region7: #{encoder_forward.1} parent=1 // loop_footer_branch
      %13 = sbr.rel target = $region3
    $region8: #{encoder_forward.1} parent=1 // loop_exit
      _
    %2377 = vsyncpa [#allocation3], 1
    %s2378 = scalar_lea.sflag [#allocation3], 1
    %2379 = vsyncpa %s2378, 1

</llo_original>
